<compile_context>
chip_gen: v7x
topology: tpu7x:2x2x1
jax: 0.10.0
libtpu: 0.0.40
codegen_flags: <defaults>
</compile_context>

<pallas_src>
import functools

import jax
import jax.numpy as jnp
from jax.experimental import pallas as pl
from jax.experimental.pallas import tpu as pltpu


def lstm_cell_kernel(x_ref, h_ref, w_ref, b_ref, c_ref,
                     h_out_ref, c_out_ref, *, hidden_size):
    H = hidden_size

    # In-kernel bf16 casts (VPU, essentially free) + in-VMEM concat of two
    # lane-aligned 128-wide tiles -> one full-depth K = I+H MXU matmul with
    # f32 accumulation, bias folded into the accumulator.
    x_bf = x_ref[...].astype(jnp.bfloat16)                    # (Bt, I)
    h_bf = h_ref[...].astype(jnp.bfloat16)                    # (Bt, H)
    xh = jnp.concatenate([x_bf, h_bf], axis=1)                # (Bt, I+H)
    z = b_ref[...] + jnp.dot(xh, w_ref[...],
                             preferred_element_type=jnp.float32)  # (Bt, 4H) f32

    # Gate math in f32. sigmoid(x) == 0.5*(1 + tanh(0.5*x)): one EUP pass per
    # element instead of exp + reciprocal. Slices are lane-aligned (H % 128 == 0).
    fio = 0.5 * (1.0 + jnp.tanh(0.5 * z[:, 0:3 * H]))
    f = fio[:, 0 * H:1 * H]
    i = fio[:, 1 * H:2 * H]
    o = fio[:, 2 * H:3 * H]
    u = jnp.tanh(z[:, 3 * H:4 * H])

    new_cell = i * u + f * c_ref[...]
    new_h = o * jnp.tanh(new_cell)

    c_out_ref[...] = new_cell.astype(c_out_ref.dtype)
    h_out_ref[...] = new_h.astype(h_out_ref.dtype)


def _pick_block_b(B):
    """Largest batch tile <= 256 that divides B with >= 2 grid steps.

    Prefers an even number of steps (v7x megacore: 2 TCs share the parallel
    axis). Falls back to the whole batch if B has no suitable divisor.
    """
    candidates = [c for c in (256, 128, 64, 32, 16, 8)
                  if B % c == 0 and B // c >= 2]
    if not candidates:
        return B
    even_nb = [c for c in candidates if (B // c) % 2 == 0]
    return (even_nb or candidates)[0]


def lstm_cell_pallas(x, h, c, weight_t_bf16, bias, *, block_b=None):
    """Single LSTM-cell step.

    x: (B, I) f32, h/c: (B, H) f32,
    weight_t_bf16: (I+H, 4H) bf16 -- transpose of PyTorch fiou_linear.weight,
                   cast to bf16 once at parameter-prep time (cached),
    bias: (4H,) f32.
    Returns (new_h, new_c), both f32, gate order [f, i, o, u].
    """
    B, I = x.shape
    H = h.shape[1]
    D = I + H
    assert weight_t_bf16.shape == (D, 4 * H)
    assert weight_t_bf16.dtype == jnp.bfloat16

    if block_b is None:
        block_b = _pick_block_b(B)
    nb = B // block_b if B % block_b == 0 else pl.cdiv(B, block_b)

    b2 = bias.reshape(1, 4 * H).astype(jnp.float32)

    kernel = functools.partial(lstm_cell_kernel, hidden_size=H)

    new_h, new_c = pl.pallas_call(
        kernel,
        out_shape=(
            jax.ShapeDtypeStruct((B, H), jnp.float32),
            jax.ShapeDtypeStruct((B, H), jnp.float32),
        ),
        grid_spec=pl.GridSpec(
            grid=(nb,),
            in_specs=[
                pl.BlockSpec((block_b, I), lambda b: (b, 0)),   # x tile (f32)
                pl.BlockSpec((block_b, H), lambda b: (b, 0)),   # h tile (f32)
                pl.BlockSpec((D, 4 * H), lambda b: (0, 0)),     # weight resident (bf16)
                pl.BlockSpec((1, 4 * H), lambda b: (0, 0)),     # bias resident (f32)
                pl.BlockSpec((block_b, H), lambda b: (b, 0)),   # c tile (f32)
            ],
            out_specs=(
                pl.BlockSpec((block_b, H), lambda b: (b, 0)),
                pl.BlockSpec((block_b, H), lambda b: (b, 0)),
            ),
        ),
        compiler_params=pltpu.CompilerParams(
            dimension_semantics=("parallel",),
            vmem_limit_bytes=8 * 1024 * 1024,
        ),
    )(x, h, weight_t_bf16, b2, c)
    return new_h, new_c


def lstm_cell_ref(x, h, c, w_t, bias):
    """Pure-JAX f32 reference mirroring the PyTorch module (fiou order)."""
    H = h.shape[1]
    z = jnp.concatenate([x, h], axis=1) @ w_t + bias
    f = jax.nn.sigmoid(z[:, 0 * H:1 * H])
    i = jax.nn.sigmoid(z[:, 1 * H:2 * H])
    o = jax.nn.sigmoid(z[:, 2 * H:3 * H])
    u = jnp.tanh(z[:, 3 * H:4 * H])
    new_cell = i * u + f * c
    new_h = o * jnp.tanh(new_cell)
    return new_h, new_cell


if __name__ == "__main__":
    # Lane-dense small shapes: H multiple of 128 so gate slices / outputs are
    # full-lane tiles; B=256 -> block_b=128 -> grid=(2,) (pipelined, and an
    # even step count for the v7x megacore).
    batch = 256
    input_size = 128
    hidden_size = 128
    D = input_size + hidden_size

    key = jax.random.PRNGKey(0)
    k_x, k_h, k_c, k_w, k_b = jax.random.split(key, 5)

    x = jax.random.normal(k_x, (batch, input_size), dtype=jnp.float32)
    h0 = jax.random.normal(k_h, (batch, hidden_size), dtype=jnp.float32)
    c0 = jax.random.normal(k_c, (batch, hidden_size), dtype=jnp.float32)

    # nn.Linear(D, 4H): uniform(-k, k), k = 1/sqrt(fan_in). PyTorch weight is
    # (4H, D); we build its transpose (D, 4H). Gate order along 4H: [f, i, o, u].
    bound = 1.0 / jnp.sqrt(jnp.float32(D))
    weight_t = jax.random.uniform(k_w, (D, 4 * hidden_size), dtype=jnp.float32,
                                  minval=-bound, maxval=bound)
    bias = jax.random.uniform(k_b, (4 * hidden_size,), dtype=jnp.float32,
                              minval=-bound, maxval=bound)

    # Parameter prep: cache the MXU weight in bf16 once (not per call).
    weight_t_bf16 = weight_t.astype(jnp.bfloat16)

    new_h, new_c = lstm_cell_pallas(x, h0, c0, weight_t_bf16, bias)
    jax.block_until_ready((new_h, new_c))

    ref_h, ref_c = lstm_cell_ref(x, h0, c0, weight_t, bias)
    # bf16 matmul operands (f32 accumulation) vs the pure-f32 reference:
    # allow O(1e-2) absolute tolerance.
    assert jnp.allclose(new_h, ref_h, atol=5e-2, rtol=5e-2), \
        float(jnp.max(jnp.abs(new_h - ref_h)))
    assert jnp.allclose(new_c, ref_c, atol=5e-2, rtol=5e-2), \
        float(jnp.max(jnp.abs(new_c - ref_c)))

    print("KERNEL_OK")
</pallas_src>

<mosaic_0001>
module attributes {stable_mosaic.version = 11 : i64} {
  func.func @lstm_cell_kernel(%arg0: i32, %arg1: memref<128x128xf32, #tpu.memory_space<vmem>>, %arg2: memref<128x128xf32, #tpu.memory_space<vmem>>, %arg3: memref<256x512xbf16, #tpu.memory_space<vmem>>, %arg4: memref<1x512xf32, #tpu.memory_space<vmem>>, %arg5: memref<128x128xf32, #tpu.memory_space<vmem>>, %arg6: memref<128x128xf32, #tpu.memory_space<vmem>>, %arg7: memref<128x128xf32, #tpu.memory_space<vmem>>) attributes {dimension_semantics = [#tpu.dimension_semantics<parallel>], iteration_bounds = array<i64: 2>, scalar_prefetch = 0 : i64, scratch_operands = 0 : i64, tpu.core_type = #tpu.core_type<tc>, window_params = [{transform_indices = @transform_0, window_bounds = array<i64: 128, 128>}, {transform_indices = @transform_1, window_bounds = array<i64: 128, 128>}, {pipeline_mode = #tpu.pipeline_mode<synchronous>, transform_indices = @transform_2, window_bounds = array<i64: 256, 512>}, {pipeline_mode = #tpu.pipeline_mode<synchronous>, transform_indices = @transform_3, window_bounds = array<i64: 1, 512>}, {transform_indices = @transform_4, window_bounds = array<i64: 128, 128>}, {transform_indices = @transform_5, window_bounds = array<i64: 128, 128>}, {transform_indices = @transform_6, window_bounds = array<i64: 128, 128>}]} {
    %c0 = arith.constant 0 : index
    %c0_0 = arith.constant 0 : index
    %0 = vector.load %arg1[%c0, %c0_0] : memref<128x128xf32, #tpu.memory_space<vmem>>, vector<128x128xf32>
    %1 = arith.truncf %0 : vector<128x128xf32> to vector<128x128xbf16>
    %c0_1 = arith.constant 0 : index
    %c0_2 = arith.constant 0 : index
    %2 = vector.load %arg2[%c0_1, %c0_2] : memref<128x128xf32, #tpu.memory_space<vmem>>, vector<128x128xf32>
    %3 = arith.truncf %2 : vector<128x128xf32> to vector<128x128xbf16>
    %4 = tpu.concatenate %1, %3 in 1 : vector<128x128xbf16>, vector<128x128xbf16> -> vector<128x256xbf16>
    %c0_3 = arith.constant 0 : index
    %c0_4 = arith.constant 0 : index
    %5 = vector.load %arg4[%c0_3, %c0_4] : memref<1x512xf32, #tpu.memory_space<vmem>>, vector<1x512xf32>
    %c0_5 = arith.constant 0 : index
    %c0_6 = arith.constant 0 : index
    %6 = vector.load %arg3[%c0_5, %c0_6] : memref<256x512xbf16, #tpu.memory_space<vmem>>, vector<256x512xbf16>
    %cst = arith.constant dense<0.000000e+00> : vector<128x512xf32>
    %7 = tpu.matmul %4, %6, %cst {dimension_numbers = #tpu.dot_dimension_numbers<[1], [0], [0], [1], [0, 0, 1, 1], [], []>} : vector<128x256xbf16>, vector<256x512xbf16>, vector<128x512xf32> -> vector<128x512xf32>
    %8 = vector.broadcast %5 : vector<1x512xf32> to vector<128x512xf32>
    %9 = arith.addf %8, %7 : vector<128x512xf32>
    %10 = vector.extract_strided_slice %9 {offsets = [0, 0], sizes = [128, 384], strides = [1, 1]} : vector<128x512xf32> to vector<128x384xf32>
    %cst_7 = arith.constant 5.000000e-01 : f32
    %11 = vector.broadcast %cst_7 : f32 to vector<128x384xf32>
    %12 = arith.mulf %11, %10 : vector<128x384xf32>
    %13 = math.tanh %12 : vector<128x384xf32>
    %cst_8 = arith.constant 1.000000e+00 : f32
    %14 = vector.broadcast %cst_8 : f32 to vector<128x384xf32>
    %15 = arith.addf %14, %13 : vector<128x384xf32>
    %cst_9 = arith.constant 5.000000e-01 : f32
    %16 = vector.broadcast %cst_9 : f32 to vector<128x384xf32>
    %17 = arith.mulf %16, %15 : vector<128x384xf32>
    %18 = vector.extract_strided_slice %17 {offsets = [0, 0], sizes = [128, 128], strides = [1, 1]} : vector<128x384xf32> to vector<128x128xf32>
    %19 = vector.extract_strided_slice %17 {offsets = [0, 128], sizes = [128, 128], strides = [1, 1]} : vector<128x384xf32> to vector<128x128xf32>
    %20 = vector.extract_strided_slice %17 {offsets = [0, 256], sizes = [128, 128], strides = [1, 1]} : vector<128x384xf32> to vector<128x128xf32>
    %21 = vector.extract_strided_slice %9 {offsets = [0, 384], sizes = [128, 128], strides = [1, 1]} : vector<128x512xf32> to vector<128x128xf32>
    %22 = math.tanh %21 : vector<128x128xf32>
    %23 = arith.mulf %19, %22 : vector<128x128xf32>
    %c0_10 = arith.constant 0 : index
    %c0_11 = arith.constant 0 : index
    %24 = vector.load %arg5[%c0_10, %c0_11] : memref<128x128xf32, #tpu.memory_space<vmem>>, vector<128x128xf32>
    %25 = arith.mulf %18, %24 : vector<128x128xf32>
    %26 = arith.addf %23, %25 : vector<128x128xf32>
    %27 = math.tanh %26 : vector<128x128xf32>
    %28 = arith.mulf %20, %27 : vector<128x128xf32>
    %c0_12 = arith.constant 0 : index
    %c0_13 = arith.constant 0 : index
    %29 = vector.load %arg7[%c0_12, %c0_13] : memref<128x128xf32, #tpu.memory_space<vmem>>, vector<128x128xf32>
    tpu.vector_store %arg7[%c0_12, %c0_13], %26 {strides = array<i32>} : memref<128x128xf32, #tpu.memory_space<vmem>>, vector<128x128xf32>,
    %c0_14 = arith.constant 0 : index
    %c0_15 = arith.constant 0 : index
    %30 = vector.load %arg6[%c0_14, %c0_15] : memref<128x128xf32, #tpu.memory_space<vmem>>, vector<128x128xf32>
    tpu.vector_store %arg6[%c0_14, %c0_15], %28 {strides = array<i32>} : memref<128x128xf32, #tpu.memory_space<vmem>>, vector<128x128xf32>,
    return
  }
  func.func @transform_0(%arg0: i32) -> (i32, i32) {
    %c0_i32 = arith.constant 0 : i32
    %c0_i32_0 = arith.constant 0 : i32
    return %arg0, %c0_i32 : i32, i32
  }
  func.func @transform_1(%arg0: i32) -> (i32, i32) {
    %c0_i32 = arith.constant 0 : i32
    %c0_i32_0 = arith.constant 0 : i32
    return %arg0, %c0_i32 : i32, i32
  }
  func.func @transform_2(%arg0: i32) -> (i32, i32) {
    %c0_i32 = arith.constant 0 : i32
    %c0_i32_0 = arith.constant 0 : i32
    %c0_i32_1 = arith.constant 0 : i32
    return %c0_i32, %c0_i32_0 : i32, i32
  }
  func.func @transform_3(%arg0: i32) -> (i32, i32) {
    %c0_i32 = arith.constant 0 : i32
    %c0_i32_0 = arith.constant 0 : i32
    %c0_i32_1 = arith.constant 0 : i32
    return %c0_i32, %c0_i32_0 : i32, i32
  }
  func.func @transform_4(%arg0: i32) -> (i32, i32) {
    %c0_i32 = arith.constant 0 : i32
    %c0_i32_0 = arith.constant 0 : i32
    return %arg0, %c0_i32 : i32, i32
  }
  func.func @transform_5(%arg0: i32) -> (i32, i32) {
    %c0_i32 = arith.constant 0 : i32
    %c0_i32_0 = arith.constant 0 : i32
    return %arg0, %c0_i32 : i32, i32
  }
  func.func @transform_6(%arg0: i32) -> (i32, i32) {
    %c0_i32 = arith.constant 0 : i32
    %c0_i32_0 = arith.constant 0 : i32
    return %arg0, %c0_i32 : i32, i32
  }
}

</mosaic_0001>

<llo_original>
// kernel: tpu_custom_call.1
$region0: #{tpu_custom_call.1}
  #allocation0 [shape = 'u32[]', space=smem, size = 0x4, offset = 0x4, fixed_abs, tag = 'smem constant byte address 0x4 - core index']
  #allocation1 [shape = 'u32[144,128]{1,0:T(1,128)}', space=vmem, size = 0x12000, scoped, tag = 'internal scratch']
  %s0 = inlined_call_operand.hbm [shape: f32[256,128], index: 0, kind: input, shape index: {}]
  %s1 = inlined_call_operand.hbm [shape: f32[256,128], index: 1, kind: input, shape index: {}]
  %s2 = inlined_call_operand.hbm [shape: bf16[256,512], index: 2, kind: input, shape index: {}]
  %s3 = inlined_call_operand.vmem [shape: f32[1,512], index: 3, kind: input, shape index: {}]
  %s4 = inlined_call_operand.hbm [shape: f32[256,128], index: 4, kind: input, shape index: {}]
  %s5 = inlined_call_operand.hbm [shape: f32[256,128], index: 5, kind: output, shape index: {0}]
  %s6 = inlined_call_operand.hbm [shape: f32[256,128], index: 6, kind: output, shape index: {1}]
  %7 = xla_tuple %s5, %s6
  %s8 = sld [smem:[#allocation0]]
  $region77: #{tpu_custom_call.1} parent=0
    _
  %s10 = ssub.s32 1, %s8
  %s11 = scalar_select 0, %s10, %s8
  $region1: #{tpu_custom_call.1} parent=0
    #allocation2 [shape = 'u8[131072]{0}', space=vmem, size = 0x20000, scoped, tag = 'input window, operand 0']
    #allocation3 [shape = 's32[2]{0}', space=sflag, size = 0x8, scoped, tag = 'scoped memory for tpu_custom_call.1']
    #allocation4 [shape = 's32[2]{0}', space=sflag, size = 0x8, scoped, tag = 'scoped memory for tpu_custom_call.1']
    #allocation5 [shape = 'u8[131072]{0}', space=vmem, size = 0x20000, scoped, tag = 'input window, operand 1']
    #allocation6 [shape = 's32[2]{0}', space=sflag, size = 0x8, scoped, tag = 'scoped memory for tpu_custom_call.1']
    #allocation7 [shape = 'u8[262144]{0}', space=vmem, size = 0x40000, scoped, tag = 'input window, operand 2, single buffered']
    #allocation8 [shape = 'u8[131072]{0}', space=vmem, size = 0x20000, scoped, tag = 'input window, operand 4']
    #allocation9 [shape = 's32[2]{0}', space=sflag, size = 0x8, scoped, tag = 'scoped memory for tpu_custom_call.1']
    #allocation10 [shape = 'u8[131072]{0}', space=vmem, size = 0x20000, scoped, tag = 'output window, operand 0']
    #allocation11 [shape = 'u8[131072]{0}', space=vmem, size = 0x20000, scoped, tag = 'output window, operand 1']
    #allocation12 [shape = 's32[2]{0}', space=sflag, size = 0x8, scoped, tag = 'scoped memory for tpu_custom_call.1']
    %12 = vsyncpa [#allocation3], 0
    %s13 = scalar_lea.sflag [#allocation3], 1
    %14 = vsyncpa %s13, 0
    %15 = vsyncpa [#allocation6], 0
    %s16 = scalar_lea.sflag [#allocation6], 1
    %17 = vsyncpa %s16, 0
    %18 = vsyncpa [#allocation9], 0
    %s19 = scalar_lea.sflag [#allocation9], 1
    %20 = vsyncpa %s19, 0
    %21 = vsyncpa [#allocation4], 0
    %s22 = scalar_lea.sflag [#allocation4], 1
    %23 = vsyncpa %s22, 0
    %24 = vsyncpa [#allocation12], 0
    %s25 = scalar_lea.sflag [#allocation12], 1
    %26 = vsyncpa %s25, 0
    loop: start=0, step=1, limit=4
    $region2: #{tpu_custom_call.1} parent=1 // loop_pre_header
      _
    $region3: #{tpu_custom_call.1} parent=1 // loop_header
      %s28 = sphi 0, %s32
      %p29 = scmp.ge.s32.totalorder %s28, 4
      %s38 = sphi 0, %s40
      %s41 = sphi 0, %s38
      %s42 = sphi 0, %s41
      %s58 = sphi 0, %s42
      %s64 = sphi 0, %s66
      %s67 = sphi 0, %s64
      %s68 = sphi 0, %s67
      %s84 = sphi 0, %s68
      %s88 = sphi 0, %s88
      %s90 = sphi 0, %s88
      %s91 = sphi 0, %s90
      %s105 = sphi 0, %s91
      %s109 = sphi 0, %s109
      %s111 = sphi 0, %s109
      %s112 = sphi 0, %s111
      %s126 = sphi 0, %s112
      %s132 = sphi 0, %s134
      %s135 = sphi 0, %s132
      %s136 = sphi 0, %s135
      %s152 = sphi 0, %s136
      %s158 = sphi 0, %s160
      %s161 = sphi 0, %s158
      %s162 = sphi 0, %s161
      %s178 = sphi 0, %s162
      %s184 = sphi 0, %s186
      %s187 = sphi 0, %s184
      %s188 = sphi 0, %s187
      %s204 = sphi 0, %s188
    $region4: #{tpu_custom_call.1} parent=1 // loop_header_branch
      %31 = sbr.rel (%p29) target = $region8
    $region5: #{tpu_custom_call.1} parent=1 // loop_body
      %s33 = ssub.s32 %s28, 1
      %s34 = ssub.s32 %s28, 2
      %s35 = sadd.s32 %s28, 1
      %s36 = ssub.s32 %s28, %s35
      %p37 = scmp.eq.s32.totalorder %s36, 0
      %s39 = sadd.s32 %s38, 1
      %s40 = scalar_select %p37, %s38, %s39
      %p43 = pneg %p37
      %p44 = scmp.eq.s32.totalorder %s28, 1
      %p45 = por %p43, %p44
      %p46 = scmp.ne.s32.totalorder %s38, %s41
      %p47 = scmp.eq.s32.totalorder %s28, 0
      %p48 = por %p46, %p47
      %p49 = scmp.ne.s32.totalorder %s38, %s41
      %p50 = scmp.eq.s32.totalorder %s33, 1
      %p51 = por %p49, %p50
      %p52 = scmp.ne.s32.totalorder %s41, %s42
      %p53 = scmp.eq.s32.totalorder %s33, 0
      %p54 = por %p52, %p53
      %p55 = scmp.ne.s32.totalorder %s41, %s42
      %p56 = scmp.eq.s32.totalorder %s34, 1
      %p57 = por %p55, %p56
      %p59 = scmp.ne.s32.totalorder %s42, %s58
      %p60 = scmp.eq.s32.totalorder %s34, 0
      %p61 = por %p59, %p60
      %s62 = ssub.s32 %s28, %s35
      %p63 = scmp.eq.s32.totalorder %s62, 0
      %s65 = sadd.s32 %s64, 1
      %s66 = scalar_select %p63, %s64, %s65
      %p69 = pneg %p63
      %p70 = scmp.eq.s32.totalorder %s28, 1
      %p71 = por %p69, %p70
      %p72 = scmp.ne.s32.totalorder %s64, %s67
      %p73 = scmp.eq.s32.totalorder %s28, 0
      %p74 = por %p72, %p73
      %p75 = scmp.ne.s32.totalorder %s64, %s67
      %p76 = scmp.eq.s32.totalorder %s33, 1
      %p77 = por %p75, %p76
      %p78 = scmp.ne.s32.totalorder %s67, %s68
      %p79 = scmp.eq.s32.totalorder %s33, 0
      %p80 = por %p78, %p79
      %p81 = scmp.ne.s32.totalorder %s67, %s68
      %p82 = scmp.eq.s32.totalorder %s34, 1
      %p83 = por %p81, %p82
      %p85 = scmp.ne.s32.totalorder %s68, %s84
      %p86 = scmp.eq.s32.totalorder %s34, 0
      %p87 = por %p85, %p86
      %s89 = sadd.s32 %s88, 1
      %p92 = scmp.eq.s32.totalorder %s28, 1
      %p93 = scmp.ne.s32.totalorder %s88, %s90
      %p94 = scmp.eq.s32.totalorder %s28, 0
      %p95 = por %p93, %p94
      %p96 = scmp.ne.s32.totalorder %s88, %s90
      %p97 = scmp.eq.s32.totalorder %s33, 1
      %p98 = por %p96, %p97
      %p99 = scmp.ne.s32.totalorder %s90, %s91
      %p100 = scmp.eq.s32.totalorder %s33, 0
      %p101 = por %p99, %p100
      %p102 = scmp.ne.s32.totalorder %s90, %s91
      %p103 = scmp.eq.s32.totalorder %s34, 1
      %p104 = por %p102, %p103
      %p106 = scmp.ne.s32.totalorder %s91, %s105
      %p107 = scmp.eq.s32.totalorder %s34, 0
      %p108 = por %p106, %p107
      %s110 = sadd.s32 %s109, 1
      %p113 = scmp.eq.s32.totalorder %s28, 1
      %p114 = scmp.ne.s32.totalorder %s109, %s111
      %p115 = scmp.eq.s32.totalorder %s28, 0
      %p116 = por %p114, %p115
      %p117 = scmp.ne.s32.totalorder %s109, %s111
      %p118 = scmp.eq.s32.totalorder %s33, 1
      %p119 = por %p117, %p118
      %p120 = scmp.ne.s32.totalorder %s111, %s112
      %p121 = scmp.eq.s32.totalorder %s33, 0
      %p122 = por %p120, %p121
      %p123 = scmp.ne.s32.totalorder %s111, %s112
      %p124 = scmp.eq.s32.totalorder %s34, 1
      %p125 = por %p123, %p124
      %p127 = scmp.ne.s32.totalorder %s112, %s126
      %p128 = scmp.eq.s32.totalorder %s34, 0
      %p129 = por %p127, %p128
      %s130 = ssub.s32 %s28, %s35
      %p131 = scmp.eq.s32.totalorder %s130, 0
      %s133 = sadd.s32 %s132, 1
      %s134 = scalar_select %p131, %s132, %s133
      %p137 = pneg %p131
      %p138 = scmp.eq.s32.totalorder %s28, 1
      %p139 = por %p137, %p138
      %p140 = scmp.ne.s32.totalorder %s132, %s135
      %p141 = scmp.eq.s32.totalorder %s28, 0
      %p142 = por %p140, %p141
      %p143 = scmp.ne.s32.totalorder %s132, %s135
      %p144 = scmp.eq.s32.totalorder %s33, 1
      %p145 = por %p143, %p144
      %p146 = scmp.ne.s32.totalorder %s135, %s136
      %p147 = scmp.eq.s32.totalorder %s33, 0
      %p148 = por %p146, %p147
      %p149 = scmp.ne.s32.totalorder %s135, %s136
      %p150 = scmp.eq.s32.totalorder %s34, 1
      %p151 = por %p149, %p150
      %p153 = scmp.ne.s32.totalorder %s136, %s152
      %p154 = scmp.eq.s32.totalorder %s34, 0
      %p155 = por %p153, %p154
      %s156 = ssub.s32 %s28, %s35
      %p157 = scmp.eq.s32.totalorder %s156, 0
      %s159 = sadd.s32 %s158, 1
      %s160 = scalar_select %p157, %s158, %s159
      %p163 = pneg %p157
      %p164 = scmp.eq.s32.totalorder %s28, 1
      %p165 = por %p163, %p164
      %p166 = scmp.ne.s32.totalorder %s158, %s161
      %p167 = scmp.eq.s32.totalorder %s28, 0
      %p168 = por %p166, %p167
      %p169 = scmp.ne.s32.totalorder %s158, %s161
      %p170 = scmp.eq.s32.totalorder %s33, 1
      %p171 = por %p169, %p170
      %p172 = scmp.ne.s32.totalorder %s161, %s162
      %p173 = scmp.eq.s32.totalorder %s33, 0
      %p174 = por %p172, %p173
      %p175 = scmp.ne.s32.totalorder %s161, %s162
      %p176 = scmp.eq.s32.totalorder %s34, 1
      %p177 = por %p175, %p176
      %p179 = scmp.ne.s32.totalorder %s162, %s178
      %p180 = scmp.eq.s32.totalorder %s34, 0
      %p181 = por %p179, %p180
      %s182 = ssub.s32 %s28, %s35
      %p183 = scmp.eq.s32.totalorder %s182, 0
      %s185 = sadd.s32 %s184, 1
      %s186 = scalar_select %p183, %s184, %s185
      %p189 = pneg %p183
      %p190 = scmp.eq.s32.totalorder %s28, 1
      %p191 = por %p189, %p190
      %p192 = scmp.ne.s32.totalorder %s184, %s187
      %p193 = scmp.eq.s32.totalorder %s28, 0
      %p194 = por %p192, %p193
      %p195 = scmp.ne.s32.totalorder %s184, %s187
      %p196 = scmp.eq.s32.totalorder %s33, 1
      %p197 = por %p195, %p196
      %p198 = scmp.ne.s32.totalorder %s187, %s188
      %p199 = scmp.eq.s32.totalorder %s33, 0
      %p200 = por %p198, %p199
      %p201 = scmp.ne.s32.totalorder %s187, %s188
      %p202 = scmp.eq.s32.totalorder %s34, 1
      %p203 = por %p201, %p202
      %p205 = scmp.ne.s32.totalorder %s188, %s204
      %p206 = scmp.eq.s32.totalorder %s34, 0
      %p207 = por %p205, %p206
      %p208 = scmp.le.s32.totalorder 1, %s28
      %p209 = scmp.lt.s32.totalorder %s28, 3
      %p210 = pnand %p208, %p209
      %p211 = pneg %p210
      // Predicated region
      $region9: #{tpu_custom_call.1} parent=5 // pred_check
        _
      $region10: #{tpu_custom_call.1} parent=5 // pred_check_branch
        %213 = sbr.rel (%p210) target = $region12
      $region11: #{tpu_custom_call.1} parent=5 // pred_region
        %s214 = ssub.s32 %s28, 1
        // Predicated region
        $region13: #{tpu_custom_call.1} parent=11 // pred_check
          %p215 = pneg %p101
        $region14: #{tpu_custom_call.1} parent=11 // pred_check_branch
          %217 = sbr.rel (%p215) target = $region16
        $region15: #{tpu_custom_call.1} parent=11 // pred_region
          %s219 = ssub.s32 8192, 8192
          %220 = vsyncadd [#allocation6], %s219
          %s221 = sshll.u32 [#allocation7], 4
          %s222 = int_to_ptr.vmem [resolvable:$true] %s221
          %227 = dma.hbm_to_vmem [thread:$0]  %s2, 8192, %s222, [#allocation6], 256, 256, 16
        $region16: #{tpu_custom_call.1} parent=11 // pred_fallthru
          _
        // Predicated region
        $region17: #{tpu_custom_call.1} parent=11 // pred_check
          %p228 = pneg %p122
        $region18: #{tpu_custom_call.1} parent=11 // pred_check_branch
          %230 = sbr.rel (%p228) target = $region20
        $region19: #{tpu_custom_call.1} parent=11 // pred_region
          _
        $region20: #{tpu_custom_call.1} parent=11 // pred_fallthru
          _
      $region12: #{tpu_custom_call.1} parent=5 // pred_fallthru
        _
      %p231 = scmp.lt.s32.totalorder %s28, 2
      // Predicated region
      $region21: #{tpu_custom_call.1} parent=5 // pred_check
        %p232 = pneg %p231
      $region22: #{tpu_custom_call.1} parent=5 // pred_check_branch
        %234 = sbr.rel (%p232) target = $region24
      $region23: #{tpu_custom_call.1} parent=5 // pred_region
        // Predicated region
        $region25: #{tpu_custom_call.1} parent=23 // pred_check
          %p235 = pneg %p48
        $region26: #{tpu_custom_call.1} parent=23 // pred_check_branch
          %237 = sbr.rel (%p235) target = $region28
        $region27: #{tpu_custom_call.1} parent=23 // pred_region
          %s238 = sand.u32 %s38, 1
          %s239 = scalar_lea.sflag [#allocation3], %s238
          %s240 = sand.u32 %s38, 1
          %s241 = smul.addr %s240, 128
          %s242 = scalar_lea.vmem [#allocation2], %s241
          %s243 = smul.u32 16, %s28
          %s245 = ssub.s32 2048, 2048
          %246 = vsyncadd %s239, %s245
          %s247 = smul.addr %s243, 128
          %s248 = scalar_lea.hbm %s0, %s247
          %s249 = sshll.u32 %s242, 4
          %s250 = int_to_ptr.vmem [resolvable:$true] %s249
          %255 = dma.hbm_to_vmem [thread:$0]  %s248, 2048, %s250, %s239, 128, 128, 8
        $region28: #{tpu_custom_call.1} parent=23 // pred_fallthru
          _
        // Predicated region
        $region29: #{tpu_custom_call.1} parent=23 // pred_check
          %p256 = pneg %p74
        $region30: #{tpu_custom_call.1} parent=23 // pred_check_branch
          %258 = sbr.rel (%p256) target = $region32
        $region31: #{tpu_custom_call.1} parent=23 // pred_region
          %s259 = sand.u32 %s28, 1
          %s260 = scalar_lea.sflag [#allocation6], %s259
          %s261 = sand.u32 %s64, 1
          %s262 = smul.addr %s261, 128
          %s263 = scalar_lea.vmem [#allocation5], %s262
          %s264 = smul.u32 16, %s28
          %s266 = ssub.s32 2048, 2048
          %267 = vsyncadd %s260, %s266
          %s268 = smul.addr %s264, 128
          %s269 = scalar_lea.hbm %s1, %s268
          %s270 = sshll.u32 %s263, 4
          %s271 = int_to_ptr.vmem [resolvable:$true] %s270
          %276 = dma.hbm_to_vmem [thread:$0]  %s269, 2048, %s271, %s260, 128, 128, 8
        $region32: #{tpu_custom_call.1} parent=23 // pred_fallthru
          _
        // Predicated region
        $region33: #{tpu_custom_call.1} parent=23 // pred_check
          %p277 = pneg %p142
        $region34: #{tpu_custom_call.1} parent=23 // pred_check_branch
          %279 = sbr.rel (%p277) target = $region36
        $region35: #{tpu_custom_call.1} parent=23 // pred_region
          %s280 = sand.u32 %s132, 1
          %s281 = scalar_lea.sflag [#allocation9], %s280
          %s282 = sand.u32 %s132, 1
          %s283 = smul.addr %s282, 128
          %s284 = scalar_lea.vmem [#allocation8], %s283
          %s285 = smul.u32 16, %s28
          %s287 = ssub.s32 2048, 2048
          %288 = vsyncadd %s281, %s287
          %s289 = smul.addr %s285, 128
          %s290 = scalar_lea.hbm %s4, %s289
          %s291 = sshll.u32 %s284, 4
          %s292 = int_to_ptr.vmem [resolvable:$true] %s291
          %297 = dma.hbm_to_vmem [thread:$0]  %s290, 2048, %s292, %s281, 128, 128, 8
        $region36: #{tpu_custom_call.1} parent=23 // pred_fallthru
          _
      $region24: #{tpu_custom_call.1} parent=5 // pred_fallthru
        _
      %p298 = scmp.le.s32.totalorder 1, %s28
      %p299 = scmp.lt.s32.totalorder %s28, 3
      %p300 = pnand %p298, %p299
      %p301 = pneg %p300
      // Predicated region
      $region37: #{tpu_custom_call.1} parent=5 // pred_check
        _
      $region38: #{tpu_custom_call.1} parent=5 // pred_check_branch
        %303 = sbr.rel (%p300) target = $region40
      $region39: #{tpu_custom_call.1} parent=5 // pred_region
        %s304 = ssub.s32 %s28, 1
        %s305 = sand.u32 %s41, 1
        %s306 = scalar_lea.sflag [#allocation3], %s305
        %s307 = sand.u32 %s41, 1
        %s308 = smul.addr %s307, 128
        %s309 = scalar_lea.vmem [#allocation2], %s308
        // Predicated region
        $region41: #{tpu_custom_call.1} parent=39 // pred_check
          %p310 = pneg %p54
        $region42: #{tpu_custom_call.1} parent=39 // pred_check_branch
          %312 = sbr.rel (%p310) target = $region44
        $region43: #{tpu_custom_call.1} parent=39 // pred_region
          %313 = dma.done %s306, 2048
        $region44: #{tpu_custom_call.1} parent=39 // pred_fallthru
          _
        %s314 = sand.u32 %s33, 1
        %s315 = scalar_lea.sflag [#allocation6], %s314
        %s316 = sand.u32 %s67, 1
        %s317 = smul.addr %s316, 128
        %s318 = scalar_lea.vmem [#allocation5], %s317
        // Predicated region
        $region45: #{tpu_custom_call.1} parent=39 // pred_check
          %p319 = pneg %p80
        $region46: #{tpu_custom_call.1} parent=39 // pred_check_branch
          %321 = sbr.rel (%p319) target = $region48
        $region47: #{tpu_custom_call.1} parent=39 // pred_region
          %322 = dma.done %s315, 2048
        $region48: #{tpu_custom_call.1} parent=39 // pred_fallthru
          _
        // Predicated region
        $region49: #{tpu_custom_call.1} parent=39 // pred_check
          %p323 = pneg %p101
        $region50: #{tpu_custom_call.1} parent=39 // pred_check_branch
          %325 = sbr.rel (%p323) target = $region52
        $region51: #{tpu_custom_call.1} parent=39 // pred_region
          %326 = dma.done [#allocation6], 8192
        $region52: #{tpu_custom_call.1} parent=39 // pred_fallthru
          _
        %s327 = sand.u32 %s135, 1
        %s328 = scalar_lea.sflag [#allocation9], %s327
        %s329 = sand.u32 %s135, 1
        %s330 = smul.addr %s329, 128
        %s331 = scalar_lea.vmem [#allocation8], %s330
        // Predicated region
        $region53: #{tpu_custom_call.1} parent=39 // pred_check
          %p332 = pneg %p148
        $region54: #{tpu_custom_call.1} parent=39 // pred_check_branch
          %334 = sbr.rel (%p332) target = $region56
        $region55: #{tpu_custom_call.1} parent=39 // pred_region
          %335 = dma.done %s328, 2048
        $region56: #{tpu_custom_call.1} parent=39 // pred_fallthru
          _
        %s336 = sand.u32 %s41, 1
        %s337 = scalar_lea.sflag [#allocation3], %s336
        %s338 = sand.u32 %s41, 1
        %s339 = smul.addr %s338, 128
        %s340 = scalar_lea.vmem [#allocation2], %s339
        %p341 = pneg %p54
        %p342 = pneg %p51
        %s343 = sand.u32 %s33, 1
        %s344 = scalar_lea.sflag [#allocation6], %s343
        %s345 = sand.u32 %s67, 1
        %s346 = smul.addr %s345, 128
        %s347 = scalar_lea.vmem [#allocation5], %s346
        %p348 = pneg %p80
        %p349 = pneg %p77
        %p350 = pneg %p101
        %p351 = pneg %p98
        %p352 = pneg %p122
        %p353 = pneg %p119
        %s354 = sand.u32 %s135, 1
        %s355 = scalar_lea.sflag [#allocation9], %s354
        %s356 = sand.u32 %s135, 1
        %s357 = smul.addr %s356, 128
        %s358 = scalar_lea.vmem [#allocation8], %s357
        %p359 = pneg %p148
        %p360 = pneg %p145
        %p361 = pneg %p174
        %p362 = pneg %p171
        %s363 = sand.u32 %s161, 1
        %s364 = scalar_lea.sflag [#allocation4], %s363
        %s365 = sand.u32 %s161, 1
        %s366 = smul.addr %s365, 128
        %s367 = scalar_lea.vmem [#allocation10], %s366
        %p368 = pneg %p200
        %p369 = pneg %p197
        %s370 = sand.u32 %s187, 1
        %s371 = scalar_lea.sflag [#allocation12], %s370
        %s372 = sand.u32 %s187, 1
        %s373 = smul.addr %s372, 128
        %s374 = scalar_lea.vmem [#allocation11], %s373
        %s375 = smul.u32 16, %s33
        %s376 = smul.u32 16, %s33
        %s377 = smul.u32 16, %s33
        %s378 = smul.u32 16, %s33
        %s379 = smul.u32 16, %s33
        %v380 = vld [vmem:[%s309] sm:$0xff]
        %v381 = vld [vmem:[%s309 + $0x8] sm:$0xff]
        %v382 = vld [vmem:[%s309 + $0x10] sm:$0xff]
        %v383 = vld [vmem:[%s309 + $0x18] sm:$0xff]
        %v384 = vld [vmem:[%s309 + $0x20] sm:$0xff]
        %v385 = vld [vmem:[%s309 + $0x28] sm:$0xff]
        %v386 = vld [vmem:[%s309 + $0x30] sm:$0xff]
        %v387 = vld [vmem:[%s309 + $0x38] sm:$0xff]
        %v388 = vld [vmem:[%s309 + $0x40] sm:$0xff]
        %v389 = vld [vmem:[%s309 + $0x48] sm:$0xff]
        %v390 = vld [vmem:[%s309 + $0x50] sm:$0xff]
        %v391 = vld [vmem:[%s309 + $0x58] sm:$0xff]
        %v392 = vld [vmem:[%s309 + $0x60] sm:$0xff]
        %v393 = vld [vmem:[%s309 + $0x68] sm:$0xff]
        %v394 = vld [vmem:[%s309 + $0x70] sm:$0xff]
        %v395 = vld [vmem:[%s309 + $0x78] sm:$0xff]
        %v396 = vpack.c.bf16 %v381, %v380
        %v397 = vpack.c.bf16 %v383, %v382
        %v398 = vpack.c.bf16 %v385, %v384
        %v399 = vpack.c.bf16 %v387, %v386
        %v400 = vpack.c.bf16 %v389, %v388
        %v401 = vpack.c.bf16 %v391, %v390
        %v402 = vpack.c.bf16 %v393, %v392
        %v403 = vpack.c.bf16 %v395, %v394
        %v404 = vld [vmem:[%s318] sm:$0xff]
        %v405 = vld [vmem:[%s318 + $0x8] sm:$0xff]
        %v406 = vld [vmem:[%s318 + $0x10] sm:$0xff]
        %v407 = vld [vmem:[%s318 + $0x18] sm:$0xff]
        %v408 = vld [vmem:[%s318 + $0x20] sm:$0xff]
        %v409 = vld [vmem:[%s318 + $0x28] sm:$0xff]
        %v410 = vld [vmem:[%s318 + $0x30] sm:$0xff]
        %v411 = vld [vmem:[%s318 + $0x38] sm:$0xff]
        %v412 = vld [vmem:[%s318 + $0x40] sm:$0xff]
        %v413 = vld [vmem:[%s318 + $0x48] sm:$0xff]
        %v414 = vld [vmem:[%s318 + $0x50] sm:$0xff]
        %v415 = vld [vmem:[%s318 + $0x58] sm:$0xff]
        %v416 = vld [vmem:[%s318 + $0x60] sm:$0xff]
        %v417 = vld [vmem:[%s318 + $0x68] sm:$0xff]
        %v418 = vld [vmem:[%s318 + $0x70] sm:$0xff]
        %v419 = vld [vmem:[%s318 + $0x78] sm:$0xff]
        %v420 = vpack.c.bf16 %v405, %v404
        %v421 = vpack.c.bf16 %v407, %v406
        %v422 = vpack.c.bf16 %v409, %v408
        %v423 = vpack.c.bf16 %v411, %v410
        %v424 = vpack.c.bf16 %v413, %v412
        %v425 = vpack.c.bf16 %v415, %v414
        %v426 = vpack.c.bf16 %v417, %v416
        %v427 = vpack.c.bf16 %v419, %v418
        %v428 = vld [vmem:[%s3] sm:$0xf]
        %v429 = vld [vmem:[#allocation7] sm:$0xff]
        %v430 = vld [vmem:[#allocation7 + $0x8] sm:$0xff]
        %v431 = vld [vmem:[#allocation7 + $0x10] sm:$0xff]
        %v432 = vld [vmem:[#allocation7 + $0x18] sm:$0xff]
        %v433 = vld [vmem:[#allocation7 + $0x20] sm:$0xff]
        %v434 = vld [vmem:[#allocation7 + $0x28] sm:$0xff]
        %v435 = vld [vmem:[#allocation7 + $0x30] sm:$0xff]
        %v436 = vld [vmem:[#allocation7 + $0x38] sm:$0xff]
        %v437 = vld [vmem:[#allocation7 + $0x40] sm:$0xff]
        %v438 = vld [vmem:[#allocation7 + $0x48] sm:$0xff]
        %v439 = vld [vmem:[#allocation7 + $0x50] sm:$0xff]
        %v440 = vld [vmem:[#allocation7 + $0x58] sm:$0xff]
        %v441 = vld [vmem:[#allocation7 + $0x60] sm:$0xff]
        %v442 = vld [vmem:[#allocation7 + $0x68] sm:$0xff]
        %v443 = vld [vmem:[#allocation7 + $0x70] sm:$0xff]
        %v444 = vld [vmem:[#allocation7 + $0x78] sm:$0xff]
        %v445 = vld [vmem:[#allocation7 + $0x80] sm:$0xff]
        %v446 = vld [vmem:[#allocation7 + $0x88] sm:$0xff]
        %v447 = vld [vmem:[#allocation7 + $0x90] sm:$0xff]
        %v448 = vld [vmem:[#allocation7 + $0x98] sm:$0xff]
        %v449 = vld [vmem:[#allocation7 + $0xa0] sm:$0xff]
        %v450 = vld [vmem:[#allocation7 + $0xa8] sm:$0xff]
        %v451 = vld [vmem:[#allocation7 + $0xb0] sm:$0xff]
        %v452 = vld [vmem:[#allocation7 + $0xb8] sm:$0xff]
        %v453 = vld [vmem:[#allocation7 + $0xc0] sm:$0xff]
        %v454 = vld [vmem:[#allocation7 + $0xc8] sm:$0xff]
        %v455 = vld [vmem:[#allocation7 + $0xd0] sm:$0xff]
        %v456 = vld [vmem:[#allocation7 + $0xd8] sm:$0xff]
        %v457 = vld [vmem:[#allocation7 + $0xe0] sm:$0xff]
        %v458 = vld [vmem:[#allocation7 + $0xe8] sm:$0xff]
        %v459 = vld [vmem:[#allocation7 + $0xf0] sm:$0xff]
        %v460 = vld [vmem:[#allocation7 + $0xf8] sm:$0xff]
        %v461 = vld [vmem:[#allocation7 + $0x100] sm:$0xff]
        %v462 = vld [vmem:[#allocation7 + $0x108] sm:$0xff]
        %v463 = vld [vmem:[#allocation7 + $0x110] sm:$0xff]
        %v464 = vld [vmem:[#allocation7 + $0x118] sm:$0xff]
        %v465 = vld [vmem:[#allocation7 + $0x120] sm:$0xff]
        %v466 = vld [vmem:[#allocation7 + $0x128] sm:$0xff]
        %v467 = vld [vmem:[#allocation7 + $0x130] sm:$0xff]
        %v468 = vld [vmem:[#allocation7 + $0x138] sm:$0xff]
        %v469 = vld [vmem:[#allocation7 + $0x140] sm:$0xff]
        %v470 = vld [vmem:[#allocation7 + $0x148] sm:$0xff]
        %v471 = vld [vmem:[#allocation7 + $0x150] sm:$0xff]
        %v472 = vld [vmem:[#allocation7 + $0x158] sm:$0xff]
        %v473 = vld [vmem:[#allocation7 + $0x160] sm:$0xff]
        %v474 = vld [vmem:[#allocation7 + $0x168] sm:$0xff]
        %v475 = vld [vmem:[#allocation7 + $0x170] sm:$0xff]
        %v476 = vld [vmem:[#allocation7 + $0x178] sm:$0xff]
        %v477 = vld [vmem:[#allocation7 + $0x180] sm:$0xff]
        %v478 = vld [vmem:[#allocation7 + $0x188] sm:$0xff]
        %v479 = vld [vmem:[#allocation7 + $0x190] sm:$0xff]
        %v480 = vld [vmem:[#allocation7 + $0x198] sm:$0xff]
        %v481 = vld [vmem:[#allocation7 + $0x1a0] sm:$0xff]
        %v482 = vld [vmem:[#allocation7 + $0x1a8] sm:$0xff]
        %v483 = vld [vmem:[#allocation7 + $0x1b0] sm:$0xff]
        %v484 = vld [vmem:[#allocation7 + $0x1b8] sm:$0xff]
        %v485 = vld [vmem:[#allocation7 + $0x1c0] sm:$0xff]
        %v486 = vld [vmem:[#allocation7 + $0x1c8] sm:$0xff]
        %v487 = vld [vmem:[#allocation7 + $0x1d0] sm:$0xff]
        %v488 = vld [vmem:[#allocation7 + $0x1d8] sm:$0xff]
        %v489 = vld [vmem:[#allocation7 + $0x1e0] sm:$0xff]
        %v490 = vld [vmem:[#allocation7 + $0x1e8] sm:$0xff]
        %v491 = vld [vmem:[#allocation7 + $0x1f0] sm:$0xff]
        %v492 = vld [vmem:[#allocation7 + $0x1f8] sm:$0xff]
        %v557 = vunpack.c.l.b16 %v429
        %v558 = vunpack.c.h.b16 %v429
        %v559 = vunpack.c.l.b16 %v430
        %v560 = vunpack.c.h.b16 %v430
        %v561 = vunpack.c.l.b16 %v431
        %v562 = vunpack.c.h.b16 %v431
        %v563 = vunpack.c.l.b16 %v432
        %v564 = vunpack.c.h.b16 %v432
        %v565 = vunpack.c.l.b16 %v433
        %v566 = vunpack.c.h.b16 %v433
        %v567 = vunpack.c.l.b16 %v434
        %v568 = vunpack.c.h.b16 %v434
        %v569 = vunpack.c.l.b16 %v435
        %v570 = vunpack.c.h.b16 %v435
        %v571 = vunpack.c.l.b16 %v436
        %v572 = vunpack.c.h.b16 %v436
        %v573 = vunpack.c.l.b16 %v437
        %v574 = vunpack.c.h.b16 %v437
        %v575 = vunpack.c.l.b16 %v438
        %v576 = vunpack.c.h.b16 %v438
        %v577 = vunpack.c.l.b16 %v439
        %v578 = vunpack.c.h.b16 %v439
        %v579 = vunpack.c.l.b16 %v440
        %v580 = vunpack.c.h.b16 %v440
        %v581 = vunpack.c.l.b16 %v441
        %v582 = vunpack.c.h.b16 %v441
        %v583 = vunpack.c.l.b16 %v442
        %v584 = vunpack.c.h.b16 %v442
        %v585 = vunpack.c.l.b16 %v443
        %v586 = vunpack.c.h.b16 %v443
        %v587 = vunpack.c.l.b16 %v444
        %v588 = vunpack.c.h.b16 %v444
        %v589 = vunpack.c.l.b16 %v445
        %v590 = vunpack.c.h.b16 %v445
        %v591 = vunpack.c.l.b16 %v446
        %v592 = vunpack.c.h.b16 %v446
        %v593 = vunpack.c.l.b16 %v447
        %v594 = vunpack.c.h.b16 %v447
        %v595 = vunpack.c.l.b16 %v448
        %v596 = vunpack.c.h.b16 %v448
        %v597 = vunpack.c.l.b16 %v449
        %v598 = vunpack.c.h.b16 %v449
        %v599 = vunpack.c.l.b16 %v450
        %v600 = vunpack.c.h.b16 %v450
        %v601 = vunpack.c.l.b16 %v451
        %v602 = vunpack.c.h.b16 %v451
        %v603 = vunpack.c.l.b16 %v452
        %v604 = vunpack.c.h.b16 %v452
        %v605 = vunpack.c.l.b16 %v453
        %v606 = vunpack.c.h.b16 %v453
        %v607 = vunpack.c.l.b16 %v454
        %v608 = vunpack.c.h.b16 %v454
        %v609 = vunpack.c.l.b16 %v455
        %v610 = vunpack.c.h.b16 %v455
        %v611 = vunpack.c.l.b16 %v456
        %v612 = vunpack.c.h.b16 %v456
        %v613 = vunpack.c.l.b16 %v457
        %v614 = vunpack.c.h.b16 %v457
        %v615 = vunpack.c.l.b16 %v458
        %v616 = vunpack.c.h.b16 %v458
        %v617 = vunpack.c.l.b16 %v459
        %v618 = vunpack.c.h.b16 %v459
        %v619 = vunpack.c.l.b16 %v460
        %v620 = vunpack.c.h.b16 %v460
        %v621 = vunpack.c.l.b16 %v461
        %v622 = vunpack.c.h.b16 %v461
        %v623 = vunpack.c.l.b16 %v462
        %v624 = vunpack.c.h.b16 %v462
        %v625 = vunpack.c.l.b16 %v463
        %v626 = vunpack.c.h.b16 %v463
        %v627 = vunpack.c.l.b16 %v464
        %v628 = vunpack.c.h.b16 %v464
        %v629 = vunpack.c.l.b16 %v465
        %v630 = vunpack.c.h.b16 %v465
        %v631 = vunpack.c.l.b16 %v466
        %v632 = vunpack.c.h.b16 %v466
        %v633 = vunpack.c.l.b16 %v467
        %v634 = vunpack.c.h.b16 %v467
        %v635 = vunpack.c.l.b16 %v468
        %v636 = vunpack.c.h.b16 %v468
        %v637 = vunpack.c.l.b16 %v469
        %v638 = vunpack.c.h.b16 %v469
        %v639 = vunpack.c.l.b16 %v470
        %v640 = vunpack.c.h.b16 %v470
        %v641 = vunpack.c.l.b16 %v471
        %v642 = vunpack.c.h.b16 %v471
        %v643 = vunpack.c.l.b16 %v472
        %v644 = vunpack.c.h.b16 %v472
        %v645 = vunpack.c.l.b16 %v473
        %v646 = vunpack.c.h.b16 %v473
        %v647 = vunpack.c.l.b16 %v474
        %v648 = vunpack.c.h.b16 %v474
        %v649 = vunpack.c.l.b16 %v475
        %v650 = vunpack.c.h.b16 %v475
        %v651 = vunpack.c.l.b16 %v476
        %v652 = vunpack.c.h.b16 %v476
        %v653 = vunpack.c.l.b16 %v477
        %v654 = vunpack.c.h.b16 %v477
        %v655 = vunpack.c.l.b16 %v478
        %v656 = vunpack.c.h.b16 %v478
        %v657 = vunpack.c.l.b16 %v479
        %v658 = vunpack.c.h.b16 %v479
        %v659 = vunpack.c.l.b16 %v480
        %v660 = vunpack.c.h.b16 %v480
        %v661 = vunpack.c.l.b16 %v481
        %v662 = vunpack.c.h.b16 %v481
        %v663 = vunpack.c.l.b16 %v482
        %v664 = vunpack.c.h.b16 %v482
        %v665 = vunpack.c.l.b16 %v483
        %v666 = vunpack.c.h.b16 %v483
        %v667 = vunpack.c.l.b16 %v484
        %v668 = vunpack.c.h.b16 %v484
        %v669 = vunpack.c.l.b16 %v485
        %v670 = vunpack.c.h.b16 %v485
        %v671 = vunpack.c.l.b16 %v486
        %v672 = vunpack.c.h.b16 %v486
        %v673 = vunpack.c.l.b16 %v487
        %v674 = vunpack.c.h.b16 %v487
        %v675 = vunpack.c.l.b16 %v488
        %v676 = vunpack.c.h.b16 %v488
        %v677 = vunpack.c.l.b16 %v489
        %v678 = vunpack.c.h.b16 %v489
        %v679 = vunpack.c.l.b16 %v490
        %v680 = vunpack.c.h.b16 %v490
        %v681 = vunpack.c.l.b16 %v491
        %v682 = vunpack.c.h.b16 %v491
        %v683 = vunpack.c.l.b16 %v492
        %v684 = vunpack.c.h.b16 %v492
        %v685 = vpack.c.b16 %v561, %v557
        %v686 = vpack.c.b16 %v562, %v558
        %v687 = vpack.c.b16 %v563, %v559
        %v688 = vpack.c.b16 %v564, %v560
        %v689 = vpack.c.b16 %v569, %v565
        %v690 = vpack.c.b16 %v570, %v566
        %v691 = vpack.c.b16 %v571, %v567
        %v692 = vpack.c.b16 %v572, %v568
        %v693 = vpack.c.b16 %v577, %v573
        %v694 = vpack.c.b16 %v578, %v574
        %v695 = vpack.c.b16 %v579, %v575
        %v696 = vpack.c.b16 %v580, %v576
        %v697 = vpack.c.b16 %v585, %v581
        %v698 = vpack.c.b16 %v586, %v582
        %v699 = vpack.c.b16 %v587, %v583
        %v700 = vpack.c.b16 %v588, %v584
        %v701 = vpack.c.b16 %v593, %v589
        %v702 = vpack.c.b16 %v594, %v590
        %v703 = vpack.c.b16 %v595, %v591
        %v704 = vpack.c.b16 %v596, %v592
        %v705 = vpack.c.b16 %v601, %v597
        %v706 = vpack.c.b16 %v602, %v598
        %v707 = vpack.c.b16 %v603, %v599
        %v708 = vpack.c.b16 %v604, %v600
        %v709 = vpack.c.b16 %v609, %v605
        %v710 = vpack.c.b16 %v610, %v606
        %v711 = vpack.c.b16 %v611, %v607
        %v712 = vpack.c.b16 %v612, %v608
        %v713 = vpack.c.b16 %v617, %v613
        %v714 = vpack.c.b16 %v618, %v614
        %v715 = vpack.c.b16 %v619, %v615
        %v716 = vpack.c.b16 %v620, %v616
        %v717 = vpack.c.b16 %v625, %v621
        %v718 = vpack.c.b16 %v626, %v622
        %v719 = vpack.c.b16 %v627, %v623
        %v720 = vpack.c.b16 %v628, %v624
        %v721 = vpack.c.b16 %v633, %v629
        %v722 = vpack.c.b16 %v634, %v630
        %v723 = vpack.c.b16 %v635, %v631
        %v724 = vpack.c.b16 %v636, %v632
        %v725 = vpack.c.b16 %v641, %v637
        %v726 = vpack.c.b16 %v642, %v638
        %v727 = vpack.c.b16 %v643, %v639
        %v728 = vpack.c.b16 %v644, %v640
        %v729 = vpack.c.b16 %v649, %v645
        %v730 = vpack.c.b16 %v650, %v646
        %v731 = vpack.c.b16 %v651, %v647
        %v732 = vpack.c.b16 %v652, %v648
        %v733 = vpack.c.b16 %v657, %v653
        %v734 = vpack.c.b16 %v658, %v654
        %v735 = vpack.c.b16 %v659, %v655
        %v736 = vpack.c.b16 %v660, %v656
        %v737 = vpack.c.b16 %v665, %v661
        %v738 = vpack.c.b16 %v666, %v662
        %v739 = vpack.c.b16 %v667, %v663
        %v740 = vpack.c.b16 %v668, %v664
        %v741 = vpack.c.b16 %v673, %v669
        %v742 = vpack.c.b16 %v674, %v670
        %v743 = vpack.c.b16 %v675, %v671
        %v744 = vpack.c.b16 %v676, %v672
        %v745 = vpack.c.b16 %v681, %v677
        %v746 = vpack.c.b16 %v682, %v678
        %v747 = vpack.c.b16 %v683, %v679
        %v748 = vpack.c.b16 %v684, %v680
        %813 = vmatprep.subr.bf16.mxu0 %v686
        %814 = vmatpush1.bf16.msra.mxu0 %v685
        %815 = vmatprep.subr.bf16.mxu0 %v690
        %816 = vmatpush1.bf16.msra.mxu0 %v689
        %817 = vmatprep.subr.bf16.mxu0 %v694
        %818 = vmatpush1.bf16.msra.mxu0 %v693
        %819 = vmatprep.subr.bf16.mxu0 %v698
        %820 = vmatpush1.bf16.msra.mxu0 %v697
        %821 = vmatprep.subr.bf16.mxu0 %v702
        %822 = vmatpush1.bf16.msra.mxu0 %v701
        %823 = vmatprep.subr.bf16.mxu0 %v706
        %824 = vmatpush1.bf16.msra.mxu0 %v705
        %825 = vmatprep.subr.bf16.mxu0 %v710
        %826 = vmatpush1.bf16.msra.mxu0 %v709
        %827 = vmatprep.subr.bf16.mxu0 %v714
        %828 = vmatpush1.bf16.msra.mxu0 %v713
        %829 = vmatprep.subr.bf16.mxu0 %v718
        %830 = vmatpush1.bf16.msra.mxu0 %v717
        %831 = vmatprep.subr.bf16.mxu0 %v722
        %832 = vmatpush1.bf16.msra.mxu0 %v721
        %833 = vmatprep.subr.bf16.mxu0 %v726
        %834 = vmatpush1.bf16.msra.mxu0 %v725
        %835 = vmatprep.subr.bf16.mxu0 %v730
        %836 = vmatpush1.bf16.msra.mxu0 %v729
        %837 = vmatprep.subr.bf16.mxu0 %v734
        %838 = vmatpush1.bf16.msra.mxu0 %v733
        %839 = vmatprep.subr.bf16.mxu0 %v738
        %840 = vmatpush1.bf16.msra.mxu0 %v737
        %841 = vmatprep.subr.bf16.mxu0 %v742
        %842 = vmatpush1.bf16.msra.mxu0 %v741
        %843 = vmatprep.subr.bf16.mxu0 %v746
        %844 = vmatpush1.bf16.msra.mxu0 %v745
        %845 = vmatprep.mubr.bf16.mxu0 %v420
        %846 = vmatmul.mubr.bf16.gmra.mrb[0].mxu0 %v396
        %v847 = vpop.f32.mrb[0].mxu0
        %v848 = vadd.f32 0.0, %v847
        %v849 = vpop.f32.mrb[0].mxu0
        %v850 = vadd.f32 0.0, %v849
        %v851 = vpop.f32.mrb[0].mxu0
        %v852 = vadd.f32 0.0, %v851
        %v853 = vpop.f32.mrb[0].mxu0
        %v854 = vadd.f32 0.0, %v853
        %855 = vmatprep.mubr.bf16.mxu0 %v421
        %856 = vmatmul.mubr.bf16.gmra.mrb[0].mxu0 %v397
        %v857 = vpop.f32.mrb[0].mxu0
        %v858 = vadd.f32 0.0, %v857
        %v859 = vpop.f32.mrb[0].mxu0
        %v860 = vadd.f32 0.0, %v859
        %v861 = vpop.f32.mrb[0].mxu0
        %v862 = vadd.f32 0.0, %v861
        %v863 = vpop.f32.mrb[0].mxu0
        %v864 = vadd.f32 0.0, %v863
        %865 = vmatprep.mubr.bf16.mxu0 %v422
        %866 = vmatmul.mubr.bf16.gmra.mrb[0].mxu0 %v398
        %v867 = vpop.f32.mrb[0].mxu0
        %v868 = vadd.f32 0.0, %v867
        %v869 = vpop.f32.mrb[0].mxu0
        %v870 = vadd.f32 0.0, %v869
        %v871 = vpop.f32.mrb[0].mxu0
        %v872 = vadd.f32 0.0, %v871
        %v873 = vpop.f32.mrb[0].mxu0
        %v874 = vadd.f32 0.0, %v873
        %875 = vmatprep.mubr.bf16.mxu0 %v423
        %876 = vmatmul.mubr.bf16.gmra.mrb[0].mxu0 %v399
        %v877 = vpop.f32.mrb[0].mxu0
        %v878 = vadd.f32 0.0, %v877
        %v879 = vpop.f32.mrb[0].mxu0
        %v880 = vadd.f32 0.0, %v879
        %v881 = vpop.f32.mrb[0].mxu0
        %v882 = vadd.f32 0.0, %v881
        %v883 = vpop.f32.mrb[0].mxu0
        %v884 = vadd.f32 0.0, %v883
        %885 = vmatprep.mubr.bf16.mxu0 %v424
        %886 = vmatmul.mubr.bf16.gmra.mrb[0].mxu0 %v400
        %v887 = vpop.f32.mrb[0].mxu0
        %v888 = vadd.f32 0.0, %v887
        %v889 = vpop.f32.mrb[0].mxu0
        %v890 = vadd.f32 0.0, %v889
        %v891 = vpop.f32.mrb[0].mxu0
        %v892 = vadd.f32 0.0, %v891
        %v893 = vpop.f32.mrb[0].mxu0
        %v894 = vadd.f32 0.0, %v893
        %895 = vmatprep.mubr.bf16.mxu0 %v425
        %896 = vmatmul.mubr.bf16.gmra.mrb[0].mxu0 %v401
        %v897 = vpop.f32.mrb[0].mxu0
        %v898 = vadd.f32 0.0, %v897
        %v899 = vpop.f32.mrb[0].mxu0
        %v900 = vadd.f32 0.0, %v899
        %v901 = vpop.f32.mrb[0].mxu0
        %v902 = vadd.f32 0.0, %v901
        %v903 = vpop.f32.mrb[0].mxu0
        %v904 = vadd.f32 0.0, %v903
        %905 = vmatprep.mubr.bf16.mxu0 %v426
        %906 = vmatmul.mubr.bf16.gmra.mrb[0].mxu0 %v402
        %v907 = vpop.f32.mrb[0].mxu0
        %v908 = vadd.f32 0.0, %v907
        %v909 = vpop.f32.mrb[0].mxu0
        %v910 = vadd.f32 0.0, %v909
        %v911 = vpop.f32.mrb[0].mxu0
        %v912 = vadd.f32 0.0, %v911
        %v913 = vpop.f32.mrb[0].mxu0
        %v914 = vadd.f32 0.0, %v913
        %915 = vmatprep.mubr.bf16.mxu0 %v427
        %916 = vmatmul.mubr.bf16.gmra.mrb[0].mxu0 %v403
        %v917 = vpop.f32.mrb[0].mxu0
        %v918 = vadd.f32 0.0, %v917
        %v919 = vpop.f32.mrb[0].mxu0
        %v920 = vadd.f32 0.0, %v919
        %v921 = vpop.f32.mrb[0].mxu0
        %v922 = vadd.f32 0.0, %v921
        %v923 = vpop.f32.mrb[0].mxu0
        %v924 = vadd.f32 0.0, %v923
        %925 = vdwg.mxu0
        %926 = vmatprep.subr.bf16.mxu0 %v688
        %927 = vmatpush1.bf16.msra.mxu0 %v687
        %928 = vmatprep.subr.bf16.mxu0 %v692
        %929 = vmatpush1.bf16.msra.mxu0 %v691
        %930 = vmatprep.subr.bf16.mxu0 %v696
        %931 = vmatpush1.bf16.msra.mxu0 %v695
        %932 = vmatprep.subr.bf16.mxu0 %v700
        %933 = vmatpush1.bf16.msra.mxu0 %v699
        %934 = vmatprep.subr.bf16.mxu0 %v704
        %935 = vmatpush1.bf16.msra.mxu0 %v703
        %936 = vmatprep.subr.bf16.mxu0 %v708
        %937 = vmatpush1.bf16.msra.mxu0 %v707
        %938 = vmatprep.subr.bf16.mxu0 %v712
        %939 = vmatpush1.bf16.msra.mxu0 %v711
        %940 = vmatprep.subr.bf16.mxu0 %v716
        %941 = vmatpush1.bf16.msra.mxu0 %v715
        %942 = vmatprep.subr.bf16.mxu0 %v720
        %943 = vmatpush1.bf16.msra.mxu0 %v719
        %944 = vmatprep.subr.bf16.mxu0 %v724
        %945 = vmatpush1.bf16.msra.mxu0 %v723
        %946 = vmatprep.subr.bf16.mxu0 %v728
        %947 = vmatpush1.bf16.msra.mxu0 %v727
        %948 = vmatprep.subr.bf16.mxu0 %v732
        %949 = vmatpush1.bf16.msra.mxu0 %v731
        %950 = vmatprep.subr.bf16.mxu0 %v736
        %951 = vmatpush1.bf16.msra.mxu0 %v735
        %952 = vmatprep.subr.bf16.mxu0 %v740
        %953 = vmatpush1.bf16.msra.mxu0 %v739
        %954 = vmatprep.subr.bf16.mxu0 %v744
        %955 = vmatpush1.bf16.msra.mxu0 %v743
        %956 = vmatprep.subr.bf16.mxu0 %v748
        %957 = vmatpush1.bf16.msra.mxu0 %v747
        %958 = vmatprep.mubr.bf16.mxu0 %v420
        %959 = vmatmul.mubr.bf16.gmra.mrb[0].mxu0 %v396
        %v960 = vpop.f32.mrb[0].mxu0
        %v961 = vadd.f32 0.0, %v960
        %v962 = vpop.f32.mrb[0].mxu0
        %v963 = vadd.f32 0.0, %v962
        %v964 = vpop.f32.mrb[0].mxu0
        %v965 = vadd.f32 0.0, %v964
        %v966 = vpop.f32.mrb[0].mxu0
        %v967 = vadd.f32 0.0, %v966
        %968 = vmatprep.mubr.bf16.mxu0 %v421
        %969 = vmatmul.mubr.bf16.gmra.mrb[0].mxu0 %v397
        %v970 = vpop.f32.mrb[0].mxu0
        %v971 = vadd.f32 0.0, %v970
        %v972 = vpop.f32.mrb[0].mxu0
        %v973 = vadd.f32 0.0, %v972
        %v974 = vpop.f32.mrb[0].mxu0
        %v975 = vadd.f32 0.0, %v974
        %v976 = vpop.f32.mrb[0].mxu0
        %v977 = vadd.f32 0.0, %v976
        %978 = vmatprep.mubr.bf16.mxu0 %v422
        %979 = vmatmul.mubr.bf16.gmra.mrb[0].mxu0 %v398
        %v980 = vpop.f32.mrb[0].mxu0
        %v981 = vadd.f32 0.0, %v980
        %v982 = vpop.f32.mrb[0].mxu0
        %v983 = vadd.f32 0.0, %v982
        %v984 = vpop.f32.mrb[0].mxu0
        %v985 = vadd.f32 0.0, %v984
        %v986 = vpop.f32.mrb[0].mxu0
        %v987 = vadd.f32 0.0, %v986
        %988 = vmatprep.mubr.bf16.mxu0 %v423
        %989 = vmatmul.mubr.bf16.gmra.mrb[0].mxu0 %v399
        %v990 = vpop.f32.mrb[0].mxu0
        %v991 = vadd.f32 0.0, %v990
        %v992 = vpop.f32.mrb[0].mxu0
        %v993 = vadd.f32 0.0, %v992
        %v994 = vpop.f32.mrb[0].mxu0
        %v995 = vadd.f32 0.0, %v994
        %v996 = vpop.f32.mrb[0].mxu0
        %v997 = vadd.f32 0.0, %v996
        %998 = vmatprep.mubr.bf16.mxu0 %v424
        %999 = vmatmul.mubr.bf16.gmra.mrb[0].mxu0 %v400
        %v1000 = vpop.f32.mrb[0].mxu0
        %v1001 = vadd.f32 0.0, %v1000
        %v1002 = vpop.f32.mrb[0].mxu0
        %v1003 = vadd.f32 0.0, %v1002
        %v1004 = vpop.f32.mrb[0].mxu0
        %v1005 = vadd.f32 0.0, %v1004
        %v1006 = vpop.f32.mrb[0].mxu0
        %v1007 = vadd.f32 0.0, %v1006
        %1008 = vmatprep.mubr.bf16.mxu0 %v425
        %1009 = vmatmul.mubr.bf16.gmra.mrb[0].mxu0 %v401
        %v1010 = vpop.f32.mrb[0].mxu0
        %v1011 = vadd.f32 0.0, %v1010
        %v1012 = vpop.f32.mrb[0].mxu0
        %v1013 = vadd.f32 0.0, %v1012
        %v1014 = vpop.f32.mrb[0].mxu0
        %v1015 = vadd.f32 0.0, %v1014
        %v1016 = vpop.f32.mrb[0].mxu0
        %v1017 = vadd.f32 0.0, %v1016
        %1018 = vmatprep.mubr.bf16.mxu0 %v426
        %1019 = vmatmul.mubr.bf16.gmra.mrb[0].mxu0 %v402
        %v1020 = vpop.f32.mrb[0].mxu0
        %v1021 = vadd.f32 0.0, %v1020
        %v1022 = vpop.f32.mrb[0].mxu0
        %v1023 = vadd.f32 0.0, %v1022
        %v1024 = vpop.f32.mrb[0].mxu0
        %v1025 = vadd.f32 0.0, %v1024
        %v1026 = vpop.f32.mrb[0].mxu0
        %v1027 = vadd.f32 0.0, %v1026
        %1028 = vmatprep.mubr.bf16.mxu0 %v427
        %1029 = vmatmul.mubr.bf16.gmra.mrb[0].mxu0 %v403
        %v1030 = vpop.f32.mrb[0].mxu0
        %v1031 = vadd.f32 0.0, %v1030
        %v1032 = vpop.f32.mrb[0].mxu0
        %v1033 = vadd.f32 0.0, %v1032
        %v1034 = vpop.f32.mrb[0].mxu0
        %v1035 = vadd.f32 0.0, %v1034
        %v1036 = vpop.f32.mrb[0].mxu0
        %v1037 = vadd.f32 0.0, %v1036
        %1038 = vdwg.mxu0
        %v1040 = vlaneseq
        %v1041 = vshrl.u32 %v1040, 7
        %v1042 = vsub.s32 0, %v1041
        %v1043 = vrot.slane %v428, %v1042
        %v1044 = vlaneseq
        %v1045 = vshrl.u32 %v1044, 7
        %v1046 = vsub.s32 1, %v1045
        %v1047 = vrot.slane %v428, %v1046
        %v1048 = vlaneseq
        %v1049 = vshrl.u32 %v1048, 7
        %v1050 = vsub.s32 2, %v1049
        %v1051 = vrot.slane %v428, %v1050
        %v1052 = vlaneseq
        %v1053 = vshrl.u32 %v1052, 7
        %v1054 = vsub.s32 3, %v1053
        %v1055 = vrot.slane %v428, %v1054
        %v1060 = vadd.f32 %v1043, %v848
        %v1061 = vadd.f32 %v1047, %v850
        %v1062 = vadd.f32 %v1051, %v961
        %v1063 = vadd.f32 %v1055, %v963
        %v1064 = vadd.f32 %v1043, %v852
        %v1065 = vadd.f32 %v1047, %v854
        %v1066 = vadd.f32 %v1051, %v965
        %v1067 = vadd.f32 %v1055, %v967
        %v1068 = vadd.f32 %v1043, %v858
        %v1069 = vadd.f32 %v1047, %v860
        %v1070 = vadd.f32 %v1051, %v971
        %v1071 = vadd.f32 %v1055, %v973
        %v1072 = vadd.f32 %v1043, %v862
        %v1073 = vadd.f32 %v1047, %v864
        %v1074 = vadd.f32 %v1051, %v975
        %v1075 = vadd.f32 %v1055, %v977
        %v1076 = vadd.f32 %v1043, %v868
        %v1077 = vadd.f32 %v1047, %v870
        %v1078 = vadd.f32 %v1051, %v981
        %v1079 = vadd.f32 %v1055, %v983
        %v1080 = vadd.f32 %v1043, %v872
        %v1081 = vadd.f32 %v1047, %v874
        %v1082 = vadd.f32 %v1051, %v985
        %v1083 = vadd.f32 %v1055, %v987
        %v1084 = vadd.f32 %v1043, %v878
        %v1085 = vadd.f32 %v1047, %v880
        %v1086 = vadd.f32 %v1051, %v991
        %v1087 = vadd.f32 %v1055, %v993
        %v1088 = vadd.f32 %v1043, %v882
        %v1089 = vadd.f32 %v1047, %v884
        %v1090 = vadd.f32 %v1051, %v995
        %v1091 = vadd.f32 %v1055, %v997
        %v1092 = vadd.f32 %v1043, %v888
        %v1093 = vadd.f32 %v1047, %v890
        %v1094 = vadd.f32 %v1051, %v1001
        %v1095 = vadd.f32 %v1055, %v1003
        %v1096 = vadd.f32 %v1043, %v892
        %v1097 = vadd.f32 %v1047, %v894
        %v1098 = vadd.f32 %v1051, %v1005
        %v1099 = vadd.f32 %v1055, %v1007
        %v1100 = vadd.f32 %v1043, %v898
        %v1101 = vadd.f32 %v1047, %v900
        %v1102 = vadd.f32 %v1051, %v1011
        %v1103 = vadd.f32 %v1055, %v1013
        %v1104 = vadd.f32 %v1043, %v902
        %v1105 = vadd.f32 %v1047, %v904
        %v1106 = vadd.f32 %v1051, %v1015
        %v1107 = vadd.f32 %v1055, %v1017
        %v1108 = vadd.f32 %v1043, %v908
        %v1109 = vadd.f32 %v1047, %v910
        %v1110 = vadd.f32 %v1051, %v1021
        %v1111 = vadd.f32 %v1055, %v1023
        %v1112 = vadd.f32 %v1043, %v912
        %v1113 = vadd.f32 %v1047, %v914
        %v1114 = vadd.f32 %v1051, %v1025
        %v1115 = vadd.f32 %v1055, %v1027
        %v1116 = vadd.f32 %v1043, %v918
        %v1117 = vadd.f32 %v1047, %v920
        %v1118 = vadd.f32 %v1051, %v1031
        %v1119 = vadd.f32 %v1055, %v1033
        %v1120 = vadd.f32 %v1043, %v922
        %v1121 = vadd.f32 %v1047, %v924
        %v1122 = vadd.f32 %v1051, %v1035
        %v1123 = vadd.f32 %v1055, %v1037
        %v1124 = vmul.f32 %v1060, 0.5
        %v1125 = vmul.f32 %v1061, 0.5
        %v1126 = vmul.f32 %v1062, 0.5
        %v1127 = vmul.f32 %v1064, 0.5
        %v1128 = vmul.f32 %v1065, 0.5
        %v1129 = vmul.f32 %v1066, 0.5
        %v1130 = vmul.f32 %v1068, 0.5
        %v1131 = vmul.f32 %v1069, 0.5
        %v1132 = vmul.f32 %v1070, 0.5
        %v1133 = vmul.f32 %v1072, 0.5
        %v1134 = vmul.f32 %v1073, 0.5
        %v1135 = vmul.f32 %v1074, 0.5
        %v1136 = vmul.f32 %v1076, 0.5
        %v1137 = vmul.f32 %v1077, 0.5
        %v1138 = vmul.f32 %v1078, 0.5
        %v1139 = vmul.f32 %v1080, 0.5
        %v1140 = vmul.f32 %v1081, 0.5
        %v1141 = vmul.f32 %v1082, 0.5
        %v1142 = vmul.f32 %v1084, 0.5
        %v1143 = vmul.f32 %v1085, 0.5
        %v1144 = vmul.f32 %v1086, 0.5
        %v1145 = vmul.f32 %v1088, 0.5
        %v1146 = vmul.f32 %v1089, 0.5
        %v1147 = vmul.f32 %v1090, 0.5
        %v1148 = vmul.f32 %v1092, 0.5
        %v1149 = vmul.f32 %v1093, 0.5
        %v1150 = vmul.f32 %v1094, 0.5
        %v1151 = vmul.f32 %v1096, 0.5
        %v1152 = vmul.f32 %v1097, 0.5
        %v1153 = vmul.f32 %v1098, 0.5
        %v1154 = vmul.f32 %v1100, 0.5
        %v1155 = vmul.f32 %v1101, 0.5
        %v1156 = vmul.f32 %v1102, 0.5
        %v1157 = vmul.f32 %v1104, 0.5
        %v1158 = vmul.f32 %v1105, 0.5
        %v1159 = vmul.f32 %v1106, 0.5
        %v1160 = vmul.f32 %v1108, 0.5
        %v1161 = vmul.f32 %v1109, 0.5
        %v1162 = vmul.f32 %v1110, 0.5
        %v1163 = vmul.f32 %v1112, 0.5
        %v1164 = vmul.f32 %v1113, 0.5
        %v1165 = vmul.f32 %v1114, 0.5
        %v1166 = vmul.f32 %v1116, 0.5
        %v1167 = vmul.f32 %v1117, 0.5
        %v1168 = vmul.f32 %v1118, 0.5
        %v1169 = vmul.f32 %v1120, 0.5
        %v1170 = vmul.f32 %v1121, 0.5
        %v1171 = vmul.f32 %v1122, 0.5
        %v1172 = vtanh.pop %v1124
        %v1173 = vtanh.pop %v1125
        %v1174 = vtanh.pop %v1126
        %v1175 = vtanh.pop %v1127
        %v1176 = vtanh.pop %v1128
        %v1177 = vtanh.pop %v1129
        %v1178 = vtanh.pop %v1130
        %v1179 = vtanh.pop %v1131
        %v1180 = vtanh.pop %v1132
        %v1181 = vtanh.pop %v1133
        %v1182 = vtanh.pop %v1134
        %v1183 = vtanh.pop %v1135
        %v1184 = vtanh.pop %v1136
        %v1185 = vtanh.pop %v1137
        %v1186 = vtanh.pop %v1138
        %v1187 = vtanh.pop %v1139
        %v1188 = vtanh.pop %v1140
        %v1189 = vtanh.pop %v1141
        %v1190 = vtanh.pop %v1142
        %v1191 = vtanh.pop %v1143
        %v1192 = vtanh.pop %v1144
        %v1193 = vtanh.pop %v1145
        %v1194 = vtanh.pop %v1146
        %v1195 = vtanh.pop %v1147
        %v1196 = vtanh.pop %v1148
        %v1197 = vtanh.pop %v1149
        %v1198 = vtanh.pop %v1150
        %v1199 = vtanh.pop %v1151
        %v1200 = vtanh.pop %v1152
        %v1201 = vtanh.pop %v1153
        %v1202 = vtanh.pop %v1154
        %v1203 = vtanh.pop %v1155
        %v1204 = vtanh.pop %v1156
        %v1205 = vtanh.pop %v1157
        %v1206 = vtanh.pop %v1158
        %v1207 = vtanh.pop %v1159
        %v1208 = vtanh.pop %v1160
        %v1209 = vtanh.pop %v1161
        %v1210 = vtanh.pop %v1162
        %v1211 = vtanh.pop %v1163
        %v1212 = vtanh.pop %v1164
        %v1213 = vtanh.pop %v1165
        %v1214 = vtanh.pop %v1166
        %v1215 = vtanh.pop %v1167
        %v1216 = vtanh.pop %v1168
        %v1217 = vtanh.pop %v1169
        %v1218 = vtanh.pop %v1170
        %v1219 = vtanh.pop %v1171
        %v1220 = vadd.f32 %v1172, 1.0
        %v1221 = vadd.f32 %v1173, 1.0
        %v1222 = vadd.f32 %v1174, 1.0
        %v1223 = vadd.f32 %v1175, 1.0
        %v1224 = vadd.f32 %v1176, 1.0
        %v1225 = vadd.f32 %v1177, 1.0
        %v1226 = vadd.f32 %v1178, 1.0
        %v1227 = vadd.f32 %v1179, 1.0
        %v1228 = vadd.f32 %v1180, 1.0
        %v1229 = vadd.f32 %v1181, 1.0
        %v1230 = vadd.f32 %v1182, 1.0
        %v1231 = vadd.f32 %v1183, 1.0
        %v1232 = vadd.f32 %v1184, 1.0
        %v1233 = vadd.f32 %v1185, 1.0
        %v1234 = vadd.f32 %v1186, 1.0
        %v1235 = vadd.f32 %v1187, 1.0
        %v1236 = vadd.f32 %v1188, 1.0
        %v1237 = vadd.f32 %v1189, 1.0
        %v1238 = vadd.f32 %v1190, 1.0
        %v1239 = vadd.f32 %v1191, 1.0
        %v1240 = vadd.f32 %v1192, 1.0
        %v1241 = vadd.f32 %v1193, 1.0
        %v1242 = vadd.f32 %v1194, 1.0
        %v1243 = vadd.f32 %v1195, 1.0
        %v1244 = vadd.f32 %v1196, 1.0
        %v1245 = vadd.f32 %v1197, 1.0
        %v1246 = vadd.f32 %v1198, 1.0
        %v1247 = vadd.f32 %v1199, 1.0
        %v1248 = vadd.f32 %v1200, 1.0
        %v1249 = vadd.f32 %v1201, 1.0
        %v1250 = vadd.f32 %v1202, 1.0
        %v1251 = vadd.f32 %v1203, 1.0
        %v1252 = vadd.f32 %v1204, 1.0
        %v1253 = vadd.f32 %v1205, 1.0
        %v1254 = vadd.f32 %v1206, 1.0
        %v1255 = vadd.f32 %v1207, 1.0
        %v1256 = vadd.f32 %v1208, 1.0
        %v1257 = vadd.f32 %v1209, 1.0
        %v1258 = vadd.f32 %v1210, 1.0
        %v1259 = vadd.f32 %v1211, 1.0
        %v1260 = vadd.f32 %v1212, 1.0
        %v1261 = vadd.f32 %v1213, 1.0
        %v1262 = vadd.f32 %v1214, 1.0
        %v1263 = vadd.f32 %v1215, 1.0
        %v1264 = vadd.f32 %v1216, 1.0
        %v1265 = vadd.f32 %v1217, 1.0
        %v1266 = vadd.f32 %v1218, 1.0
        %v1267 = vadd.f32 %v1219, 1.0
        %v1268 = vmul.f32 %v1220, 0.5
        %v1269 = vmul.f32 %v1221, 0.5
        %v1270 = vmul.f32 %v1222, 0.5
        %v1271 = vmul.f32 %v1223, 0.5
        %v1272 = vmul.f32 %v1224, 0.5
        %v1273 = vmul.f32 %v1225, 0.5
        %v1274 = vmul.f32 %v1226, 0.5
        %v1275 = vmul.f32 %v1227, 0.5
        %v1276 = vmul.f32 %v1228, 0.5
        %v1277 = vmul.f32 %v1229, 0.5
        %v1278 = vmul.f32 %v1230, 0.5
        %v1279 = vmul.f32 %v1231, 0.5
        %v1280 = vmul.f32 %v1232, 0.5
        %v1281 = vmul.f32 %v1233, 0.5
        %v1282 = vmul.f32 %v1234, 0.5
        %v1283 = vmul.f32 %v1235, 0.5
        %v1284 = vmul.f32 %v1236, 0.5
        %v1285 = vmul.f32 %v1237, 0.5
        %v1286 = vmul.f32 %v1238, 0.5
        %v1287 = vmul.f32 %v1239, 0.5
        %v1288 = vmul.f32 %v1240, 0.5
        %v1289 = vmul.f32 %v1241, 0.5
        %v1290 = vmul.f32 %v1242, 0.5
        %v1291 = vmul.f32 %v1243, 0.5
        %v1292 = vmul.f32 %v1244, 0.5
        %v1293 = vmul.f32 %v1245, 0.5
        %v1294 = vmul.f32 %v1246, 0.5
        %v1295 = vmul.f32 %v1247, 0.5
        %v1296 = vmul.f32 %v1248, 0.5
        %v1297 = vmul.f32 %v1249, 0.5
        %v1298 = vmul.f32 %v1250, 0.5
        %v1299 = vmul.f32 %v1251, 0.5
        %v1300 = vmul.f32 %v1252, 0.5
        %v1301 = vmul.f32 %v1253, 0.5
        %v1302 = vmul.f32 %v1254, 0.5
        %v1303 = vmul.f32 %v1255, 0.5
        %v1304 = vmul.f32 %v1256, 0.5
        %v1305 = vmul.f32 %v1257, 0.5
        %v1306 = vmul.f32 %v1258, 0.5
        %v1307 = vmul.f32 %v1259, 0.5
        %v1308 = vmul.f32 %v1260, 0.5
        %v1309 = vmul.f32 %v1261, 0.5
        %v1310 = vmul.f32 %v1262, 0.5
        %v1311 = vmul.f32 %v1263, 0.5
        %v1312 = vmul.f32 %v1264, 0.5
        %v1313 = vmul.f32 %v1265, 0.5
        %v1314 = vmul.f32 %v1266, 0.5
        %v1315 = vmul.f32 %v1267, 0.5
        %v1316 = vtanh.pop %v1063
        %v1317 = vtanh.pop %v1067
        %v1318 = vtanh.pop %v1071
        %v1319 = vtanh.pop %v1075
        %v1320 = vtanh.pop %v1079
        %v1321 = vtanh.pop %v1083
        %v1322 = vtanh.pop %v1087
        %v1323 = vtanh.pop %v1091
        %v1324 = vtanh.pop %v1095
        %v1325 = vtanh.pop %v1099
        %v1326 = vtanh.pop %v1103
        %v1327 = vtanh.pop %v1107
        %v1328 = vtanh.pop %v1111
        %v1329 = vtanh.pop %v1115
        %v1330 = vtanh.pop %v1119
        %v1331 = vtanh.pop %v1123
        %v1332 = vmul.f32 %v1269, %v1316
        %v1333 = vmul.f32 %v1272, %v1317
        %v1334 = vmul.f32 %v1275, %v1318
        %v1335 = vmul.f32 %v1278, %v1319
        %v1336 = vmul.f32 %v1281, %v1320
        %v1337 = vmul.f32 %v1284, %v1321
        %v1338 = vmul.f32 %v1287, %v1322
        %v1339 = vmul.f32 %v1290, %v1323
        %v1340 = vmul.f32 %v1293, %v1324
        %v1341 = vmul.f32 %v1296, %v1325
        %v1342 = vmul.f32 %v1299, %v1326
        %v1343 = vmul.f32 %v1302, %v1327
        %v1344 = vmul.f32 %v1305, %v1328
        %v1345 = vmul.f32 %v1308, %v1329
        %v1346 = vmul.f32 %v1311, %v1330
        %v1347 = vmul.f32 %v1314, %v1331
        %v1348 = vld [vmem:[%s331] sm:$0xff]
        %v1349 = vld [vmem:[%s331 + $0x8] sm:$0xff]
        %v1350 = vld [vmem:[%s331 + $0x10] sm:$0xff]
        %v1351 = vld [vmem:[%s331 + $0x18] sm:$0xff]
        %v1352 = vld [vmem:[%s331 + $0x20] sm:$0xff]
        %v1353 = vld [vmem:[%s331 + $0x28] sm:$0xff]
        %v1354 = vld [vmem:[%s331 + $0x30] sm:$0xff]
        %v1355 = vld [vmem:[%s331 + $0x38] sm:$0xff]
        %v1356 = vld [vmem:[%s331 + $0x40] sm:$0xff]
        %v1357 = vld [vmem:[%s331 + $0x48] sm:$0xff]
        %v1358 = vld [vmem:[%s331 + $0x50] sm:$0xff]
        %v1359 = vld [vmem:[%s331 + $0x58] sm:$0xff]
        %v1360 = vld [vmem:[%s331 + $0x60] sm:$0xff]
        %v1361 = vld [vmem:[%s331 + $0x68] sm:$0xff]
        %v1362 = vld [vmem:[%s331 + $0x70] sm:$0xff]
        %v1363 = vld [vmem:[%s331 + $0x78] sm:$0xff]
        %v1364 = vmul.f32 %v1268, %v1348
        %v1365 = vmul.f32 %v1271, %v1349
        %v1366 = vmul.f32 %v1274, %v1350
        %v1367 = vmul.f32 %v1277, %v1351
        %v1368 = vmul.f32 %v1280, %v1352
        %v1369 = vmul.f32 %v1283, %v1353
        %v1370 = vmul.f32 %v1286, %v1354
        %v1371 = vmul.f32 %v1289, %v1355
        %v1372 = vmul.f32 %v1292, %v1356
        %v1373 = vmul.f32 %v1295, %v1357
        %v1374 = vmul.f32 %v1298, %v1358
        %v1375 = vmul.f32 %v1301, %v1359
        %v1376 = vmul.f32 %v1304, %v1360
        %v1377 = vmul.f32 %v1307, %v1361
        %v1378 = vmul.f32 %v1310, %v1362
        %v1379 = vmul.f32 %v1313, %v1363
        %v1380 = vadd.f32 %v1332, %v1364
        %v1381 = vadd.f32 %v1333, %v1365
        %v1382 = vadd.f32 %v1334, %v1366
        %v1383 = vadd.f32 %v1335, %v1367
        %v1384 = vadd.f32 %v1336, %v1368
        %v1385 = vadd.f32 %v1337, %v1369
        %v1386 = vadd.f32 %v1338, %v1370
        %v1387 = vadd.f32 %v1339, %v1371
        %v1388 = vadd.f32 %v1340, %v1372
        %v1389 = vadd.f32 %v1341, %v1373
        %v1390 = vadd.f32 %v1342, %v1374
        %v1391 = vadd.f32 %v1343, %v1375
        %v1392 = vadd.f32 %v1344, %v1376
        %v1393 = vadd.f32 %v1345, %v1377
        %v1394 = vadd.f32 %v1346, %v1378
        %v1395 = vadd.f32 %v1347, %v1379
        %v1396 = vtanh.pop %v1380
        %v1397 = vtanh.pop %v1381
        %v1398 = vtanh.pop %v1382
        %v1399 = vtanh.pop %v1383
        %v1400 = vtanh.pop %v1384
        %v1401 = vtanh.pop %v1385
        %v1402 = vtanh.pop %v1386
        %v1403 = vtanh.pop %v1387
        %v1404 = vtanh.pop %v1388
        %v1405 = vtanh.pop %v1389
        %v1406 = vtanh.pop %v1390
        %v1407 = vtanh.pop %v1391
        %v1408 = vtanh.pop %v1392
        %v1409 = vtanh.pop %v1393
        %v1410 = vtanh.pop %v1394
        %v1411 = vtanh.pop %v1395
        %v1412 = vmul.f32 %v1270, %v1396
        %v1413 = vmul.f32 %v1273, %v1397
        %v1414 = vmul.f32 %v1276, %v1398
        %v1415 = vmul.f32 %v1279, %v1399
        %v1416 = vmul.f32 %v1282, %v1400
        %v1417 = vmul.f32 %v1285, %v1401
        %v1418 = vmul.f32 %v1288, %v1402
        %v1419 = vmul.f32 %v1291, %v1403
        %v1420 = vmul.f32 %v1294, %v1404
        %v1421 = vmul.f32 %v1297, %v1405
        %v1422 = vmul.f32 %v1300, %v1406
        %v1423 = vmul.f32 %v1303, %v1407
        %v1424 = vmul.f32 %v1306, %v1408
        %v1425 = vmul.f32 %v1309, %v1409
        %v1426 = vmul.f32 %v1312, %v1410
        %v1427 = vmul.f32 %v1315, %v1411
        %1428 = vst [vmem:[%s374] sm:$0xff] %v1380
        %1429 = vst [vmem:[%s374 + $0x8] sm:$0xff] %v1381
        %1430 = vst [vmem:[%s374 + $0x10] sm:$0xff] %v1382
        %1431 = vst [vmem:[%s374 + $0x18] sm:$0xff] %v1383
        %1432 = vst [vmem:[%s374 + $0x20] sm:$0xff] %v1384
        %1433 = vst [vmem:[%s374 + $0x28] sm:$0xff] %v1385
        %1434 = vst [vmem:[%s374 + $0x30] sm:$0xff] %v1386
        %1435 = vst [vmem:[%s374 + $0x38] sm:$0xff] %v1387
        %1436 = vst [vmem:[%s374 + $0x40] sm:$0xff] %v1388
        %1437 = vst [vmem:[%s374 + $0x48] sm:$0xff] %v1389
        %1438 = vst [vmem:[%s374 + $0x50] sm:$0xff] %v1390
        %1439 = vst [vmem:[%s374 + $0x58] sm:$0xff] %v1391
        %1440 = vst [vmem:[%s374 + $0x60] sm:$0xff] %v1392
        %1441 = vst [vmem:[%s374 + $0x68] sm:$0xff] %v1393
        %1442 = vst [vmem:[%s374 + $0x70] sm:$0xff] %v1394
        %1443 = vst [vmem:[%s374 + $0x78] sm:$0xff] %v1395
        %1444 = vst [vmem:[%s367] sm:$0xff] %v1412
        %1445 = vst [vmem:[%s367 + $0x8] sm:$0xff] %v1413
        %1446 = vst [vmem:[%s367 + $0x10] sm:$0xff] %v1414
        %1447 = vst [vmem:[%s367 + $0x18] sm:$0xff] %v1415
        %1448 = vst [vmem:[%s367 + $0x20] sm:$0xff] %v1416
        %1449 = vst [vmem:[%s367 + $0x28] sm:$0xff] %v1417
        %1450 = vst [vmem:[%s367 + $0x30] sm:$0xff] %v1418
        %1451 = vst [vmem:[%s367 + $0x38] sm:$0xff] %v1419
        %1452 = vst [vmem:[%s367 + $0x40] sm:$0xff] %v1420
        %1453 = vst [vmem:[%s367 + $0x48] sm:$0xff] %v1421
        %1454 = vst [vmem:[%s367 + $0x50] sm:$0xff] %v1422
        %1455 = vst [vmem:[%s367 + $0x58] sm:$0xff] %v1423
        %1456 = vst [vmem:[%s367 + $0x60] sm:$0xff] %v1424
        %1457 = vst [vmem:[%s367 + $0x68] sm:$0xff] %v1425
        %1458 = vst [vmem:[%s367 + $0x70] sm:$0xff] %v1426
        %1459 = vst [vmem:[%s367 + $0x78] sm:$0xff] %v1427
        %s1460 = sand.u32 %s161, 1
        %s1461 = scalar_lea.sflag [#allocation4], %s1460
        %s1462 = sand.u32 %s161, 1
        %s1463 = smul.addr %s1462, 128
        %s1464 = scalar_lea.vmem [#allocation10], %s1463
        %s1465 = sand.u32 %s187, 1
        %s1466 = scalar_lea.sflag [#allocation12], %s1465
        %s1467 = sand.u32 %s187, 1
        %s1468 = smul.addr %s1467, 128
        %s1469 = scalar_lea.vmem [#allocation11], %s1468
        // Predicated region
        $region57: #{tpu_custom_call.1} parent=39 // pred_check
          %p1470 = pneg %p171
        $region58: #{tpu_custom_call.1} parent=39 // pred_check_branch
          %1472 = sbr.rel (%p1470) target = $region60
        $region59: #{tpu_custom_call.1} parent=39 // pred_region
          %s1473 = smul.u32 16, %s33
          %s1475 = ssub.s32 2048, 2048
          %1476 = vsyncadd %s1461, %s1475
          %s1477 = smul.addr %s1473, 128
          %s1478 = scalar_lea.hbm %s5, %s1477
          %s1479 = sshll.u32 %s1464, 4
          %s1480 = int_to_ptr.vmem [resolvable:$true] %s1479
          %1485 = dma.vmem_to_hbm [thread:$0]  %s1480, 2048, %s1478, %s1461, 128, 128, 8
        $region60: #{tpu_custom_call.1} parent=39 // pred_fallthru
          _
        // Predicated region
        $region61: #{tpu_custom_call.1} parent=39 // pred_check
          %p1486 = pneg %p197
        $region62: #{tpu_custom_call.1} parent=39 // pred_check_branch
          %1488 = sbr.rel (%p1486) target = $region64
        $region63: #{tpu_custom_call.1} parent=39 // pred_region
          %s1489 = smul.u32 16, %s33
          %s1491 = ssub.s32 2048, 2048
          %1492 = vsyncadd %s1466, %s1491
          %s1493 = smul.addr %s1489, 128
          %s1494 = scalar_lea.hbm %s6, %s1493
          %s1495 = sshll.u32 %s1469, 4
          %s1496 = int_to_ptr.vmem [resolvable:$true] %s1495
          %1501 = dma.vmem_to_hbm [thread:$0]  %s1496, 2048, %s1494, %s1466, 128, 128, 8
        $region64: #{tpu_custom_call.1} parent=39 // pred_fallthru
          _
      $region40: #{tpu_custom_call.1} parent=5 // pred_fallthru
        _
      %p1502 = scmp.le.s32.totalorder 2, %s28
      // Predicated region
      $region65: #{tpu_custom_call.1} parent=5 // pred_check
        %p1503 = pneg %p1502
      $region66: #{tpu_custom_call.1} parent=5 // pred_check_branch
        %1505 = sbr.rel (%p1503) target = $region68
      $region67: #{tpu_custom_call.1} parent=5 // pred_region
        %s1506 = ssub.s32 %s28, 2
        // Predicated region
        $region69: #{tpu_custom_call.1} parent=67 // pred_check
          %p1507 = pneg %p177
        $region70: #{tpu_custom_call.1} parent=67 // pred_check_branch
          %1509 = sbr.rel (%p1507) target = $region72
        $region71: #{tpu_custom_call.1} parent=67 // pred_region
          %s1510 = sand.u32 %s162, 1
          %s1511 = scalar_lea.sflag [#allocation4], %s1510
          %s1512 = sand.u32 %s162, 1
          %s1513 = smul.addr %s1512, 128
          %s1514 = scalar_lea.vmem [#allocation10], %s1513
          %1515 = dma.done %s1511, 2048
        $region72: #{tpu_custom_call.1} parent=67 // pred_fallthru
          _
        // Predicated region
        $region73: #{tpu_custom_call.1} parent=67 // pred_check
          %p1516 = pneg %p203
        $region74: #{tpu_custom_call.1} parent=67 // pred_check_branch
          %1518 = sbr.rel (%p1516) target = $region76
        $region75: #{tpu_custom_call.1} parent=67 // pred_region
          %s1519 = sand.u32 %s188, 1
          %s1520 = scalar_lea.sflag [#allocation12], %s1519
          %s1521 = sand.u32 %s188, 1
          %s1522 = smul.addr %s1521, 128
          %s1523 = scalar_lea.vmem [#allocation11], %s1522
          %1524 = dma.done %s1520, 2048
        $region76: #{tpu_custom_call.1} parent=67 // pred_fallthru
          _
      $region68: #{tpu_custom_call.1} parent=5 // pred_fallthru
        _
    $region6: #{tpu_custom_call.1} parent=1 // loop_footer
      %s32 = sadd.s32 1, %s28
    $region7: #{tpu_custom_call.1} parent=1 // loop_footer_branch
      %27 = sbr.rel target = $region3
    $region8: #{tpu_custom_call.1} parent=1 // loop_exit
      _
    %1525 = vsyncpa [#allocation3], 1
    %s1526 = scalar_lea.sflag [#allocation3], 1
    %1527 = vsyncpa %s1526, 1
    %1528 = vsyncpa [#allocation6], 1
    %s1529 = scalar_lea.sflag [#allocation6], 1
    %1530 = vsyncpa %s1529, 1
    %1531 = vsyncpa [#allocation9], 1
    %s1532 = scalar_lea.sflag [#allocation9], 1
    %1533 = vsyncpa %s1532, 1
    %1534 = vsyncpa [#allocation4], 1
    %s1535 = scalar_lea.sflag [#allocation4], 1
    %1536 = vsyncpa %s1535, 1
    %1537 = vsyncpa [#allocation12], 1
    %s1538 = scalar_lea.sflag [#allocation12], 1
    %1539 = vsyncpa %s1538, 1

</llo_original>
